<compile_context>
chip_gen: v7x
topology: tpu7x:2x2x1
jax: 0.10.0
libtpu: 0.0.40
codegen_flags: <defaults>
</compile_context>

<pallas_src>
import functools

import numpy as np
import jax
import jax.numpy as jnp
from jax import lax
from jax.experimental import pallas as pl
from jax.experimental.pallas import tpu as pltpu

_EPS = 1e-5  # nn.BatchNorm2d default eps


def fold_bn(conv_bias, gamma, beta, mean, var, eps=_EPS):
    """Fold conv bias + eval-mode BatchNorm into per-channel (scale, shift)."""
    s = gamma / jnp.sqrt(var + eps)
    return s, (conv_bias - mean) * s + beta


def _mxu_dot(a, b):
    # bf16 operands -> single MXU pass; f32 operands (validation path) -> full
    # precision matmul.  Accumulation is always f32.
    precision = lax.Precision.HIGHEST if a.dtype == jnp.float32 else None
    return jnp.dot(a, b, precision=precision, preferred_element_type=jnp.float32)


# ---------------------------------------------------------------------------
# Banded-weight construction (plain JAX; exact — gathers/masks only, no dots)
# ---------------------------------------------------------------------------
def _banded_conv_weights(w_hwio, width):
    """3x3 stride-1 'same' conv as per-row banded matmul weights.

    w_hwio: (KH, KW, Cin, Cout).  Returns (KH, width*Cin, width*Cout) with
      out[dy, wi*Cin+ci, wo*Cout+co] = w[dy, wi-wo+1, ci, co]  (band), else 0.
    Horizontal zero-padding is implicit (out-of-band entries are zero).
    """
    KH, KW, Cin, Cout = w_hwio.shape
    wi = np.arange(width)[:, None]
    wo = np.arange(width)[None, :]
    dx = wi - wo + (KW // 2)
    valid = (dx >= 0) & (dx < KW)
    dx = np.clip(dx, 0, KW - 1)
    g = w_hwio[:, dx, :, :]                                   # (KH, W, W, Cin, Cout)
    g = g * jnp.asarray(valid, w_hwio.dtype)[None, :, :, None, None]
    g = g.transpose(0, 1, 3, 2, 4)                            # (KH, W, Cin, W, Cout)
    return g.reshape(KH, width * Cin, width * Cout)


def _phase_banded_weights(wf, width):
    """ConvTranspose2d(k=3, s=2, p=1) as 2 banded matmuls on the low-res input.

    wf: (3, 3, Cin, Ch) spatially-flipped HWIO weight of the transposed conv.
    Returns (2, width*Cin, width*4*Ch); output lane layout is phase-planar:
      j*4*Ch + (2*py + px)*Ch + c   (depth-to-space applied outside the kernel).
    """
    Cin, Ch = wf.shape[2], wf.shape[3]
    # (output parity, input offset) -> index into the flipped 3-tap kernel.
    rmap = {(0, 0): 1, (1, 0): 0, (1, 1): 2}
    rows = []
    for dy in range(2):
        cols = []
        for dx in range(2):
            phs = []
            for ph in range(4):
                py, px = ph // 2, ph % 2
                ry, rx = rmap.get((py, dy)), rmap.get((px, dx))
                if ry is None or rx is None:
                    phs.append(jnp.zeros((Cin, Ch), wf.dtype))
                else:
                    phs.append(wf[ry, rx])
            cols.append(jnp.stack(phs))                       # (4, Cin, Ch)
        rows.append(jnp.stack(cols))                          # (2, 4, Cin, Ch)
    pw = jnp.stack(rows)                                      # (2, 2, 4, Cin, Ch)

    wi = np.arange(width)[:, None]
    j = np.arange(width)[None, :]
    d = wi - j
    valid = (d >= 0) & (d < 2)
    d = np.clip(d, 0, 1)
    g = pw[:, d]                                              # (2, W, W, 4, Cin, Ch)
    g = g * jnp.asarray(valid, pw.dtype)[None, :, :, None, None, None]
    g = g.transpose(0, 1, 4, 2, 3, 5)                         # (2, W, Cin, W, 4, Ch)
    return g.reshape(2, width * Cin, width * 4 * Ch)


def _blockdiag_1x1_weights(w11, width):
    """1x1 conv as a block-diagonal (width*Cin, width*Cout) matmul weight."""
    Cin, Cout = w11.shape
    eye = jnp.asarray(np.eye(width, dtype=np.float32))
    b = eye[:, None, :, None] * w11[None, :, None, :]         # (W, Cin, W, Cout)
    return b.reshape(width * Cin, width * Cout)


# ---------------------------------------------------------------------------
# Kernel A: phase-decomposed ConvTranspose2d + folded BN + PReLU
# ---------------------------------------------------------------------------
def _upsample_phase_kernel(x_ref, a_ref, shift_ref, alpha_ref, o_ref, *, H):
    x = x_ref[0].astype(a_ref.dtype)                          # (H+1, W*Cin), bottom row is zero pad
    acc = _mxu_dot(x[0:H], a_ref[0])                          # input-row offset 0 taps
    acc = acc + _mxu_dot(x[1:H + 1], a_ref[1])                # input-row offset 1 taps
    y = acc + shift_ref[...]                                  # folded conv bias + BN shift
    alpha = alpha_ref[0]
    y = jnp.where(y > 0, y, alpha * y)                        # PReLU (single shared alpha)
    o_ref[0] = y.astype(o_ref.dtype)                          # lane-dense (H, W*4*Ch) store


# ---------------------------------------------------------------------------
# Kernel B: fused [concat-conv + BN + PReLU] + full ResidualBlock
# ---------------------------------------------------------------------------
def _fused_tail_kernel(skip_ref, up_ref, b1_ref, sh1_ref, b11_ref, bias11_ref,
                       b2_ref, sh2_ref, b3_ref, sh3_ref, alphas_ref, o_ref,
                       pcat, pmid, *, H, WSK, WUP):
    cdt = b1_ref.dtype

    # Channel concat + spatial zero padding realized as stores into zeroed VMEM
    # scratch (rows 0 and H+1 stay zero -> exact 'same'-conv border semantics).
    pcat[...] = jnp.zeros_like(pcat)
    pmid[...] = jnp.zeros_like(pmid)
    pcat[1:H + 1, 0:WSK] = skip_ref[0].astype(cdt)
    pcat[1:H + 1, WSK:WSK + WUP] = up_ref[0].astype(cdt)

    def conv3x3(src, bw_ref):
        acc = _mxu_dot(src[0:H, :], bw_ref[0])
        acc = acc + _mxu_dot(src[1:H + 1, :], bw_ref[1])
        acc = acc + _mxu_dot(src[2:H + 2, :], bw_ref[2])
        return acc

    def prelu(v, a):
        return jnp.where(v > 0, v, a * v)

    # layers[0:3]: Conv3x3([skip, up]) + BN + PReLU
    h = prelu(conv3x3(pcat, b1_ref) + sh1_ref[...], alphas_ref[0])        # (H, W*Cout) f32

    # ResidualBlock.conv_1x1(h)  (bias only, no BN / PReLU)
    res = _mxu_dot(h.astype(cdt), b11_ref[...]) + bias11_ref[...]

    # ResidualBlock.conv_block(h)
    pmid[1:H + 1, :] = h.astype(cdt)
    t = prelu(conv3x3(pmid, b2_ref) + sh2_ref[...], alphas_ref[1])

    pmid[1:H + 1, :] = t.astype(cdt)
    y = prelu(conv3x3(pmid, b3_ref) + sh3_ref[...], alphas_ref[2])

    o_ref[0] = (y + res).astype(o_ref.dtype)                              # lane-dense store


# ---------------------------------------------------------------------------
# Forward pass
# ---------------------------------------------------------------------------
def conv_up_block_forward(p, x, skip, compute_dtype=jnp.bfloat16):
    """x: (N, Hin, Win, in_chans) NHWC.  skip: (N, Hs, Ws, 2*skip_chans) NHWC."""
    N, Hin, Win, Cin = x.shape
    Hs, Ws, Csk2 = skip.shape[1], skip.shape[2], skip.shape[3]
    Ch = p['ct_w'].shape[1]                 # in_chans // 2
    Cout = p['l_conv_w'].shape[3]

    op_h = Hs - (2 * Hin - 1)               # ConvTranspose output_padding (rows)
    op_w = Ws - (2 * Win - 1)
    assert 0 <= op_h <= 1 and 0 <= op_w <= 1, (op_h, op_w)   # torch: 0 <= op < stride

    cp = pltpu.CompilerParams(dimension_semantics=("parallel",),
                              vmem_limit_bytes=32 * 1024 * 1024)

    # ---- conv_1 (ConvTranspose2d) + BN + PReLU, phase decomposed ----
    wf = jnp.transpose(jnp.flip(p['ct_w'], axis=(2, 3)), (2, 3, 0, 1))   # (3,3,Cin,Ch) HWIO
    s0, b0 = fold_bn(p['ct_b'], *p['bn0'])
    A = _phase_banded_weights(wf, Win)
    A = (A * jnp.tile(s0, Win * 4)[None, None, :]).astype(compute_dtype)  # fold BN scale
    shift0 = jnp.tile(b0, Win * 4).reshape(1, Win * 4 * Ch).astype(jnp.float32)
    alpha0 = jnp.reshape(p['prelu0'], (1,)).astype(jnp.float32)

    x_slab = jnp.pad(x.reshape(N, Hin, Win * Cin), ((0, 0), (0, 1), (0, 0)))  # one zero row

    phase = pl.pallas_call(
        functools.partial(_upsample_phase_kernel, H=Hin),
        out_shape=jax.ShapeDtypeStruct((N, Hin, Win * 4 * Ch), compute_dtype),
        grid=(N,),
        in_specs=[
            pl.BlockSpec((1, Hin + 1, Win * Cin), lambda n: (n, 0, 0)),
            pl.BlockSpec(A.shape, lambda n: (0, 0, 0)),
            pl.BlockSpec((1, Win * 4 * Ch), lambda n: (0, 0)),
            pl.BlockSpec(memory_space=pltpu.MemorySpace.SMEM),
        ],
        out_specs=pl.BlockSpec((1, Hin, Win * 4 * Ch), lambda n: (n, 0, 0)),
        compiler_params=cp,
    )(x_slab, A, shift0, alpha0)

    # Depth-to-space (one small XLA pass) -> upsampled slab (N, Hs, Ws*Ch).
    up = phase.reshape(N, Hin, Win, 2, 2, Ch).transpose(0, 1, 3, 2, 4, 5)
    up = up.reshape(N, 2 * Hin, 2 * Win, Ch)[:, :Hs, :Ws, :]
    up_slab = up.reshape(N, Hs, Ws * Ch)
    skip_slab = skip.reshape(N, Hs, Ws * Csk2)               # free reshape, no HBM concat

    # ---- fused: Conv3x3(cat)+BN+PReLU, then the whole ResidualBlock ----
    s1, b1 = fold_bn(p['l_conv_b'], *p['l_bn'])
    w1 = p['l_conv_w']                                       # (3,3,Csk2+Ch,Cout), skip channels first
    B1 = jnp.concatenate([_banded_conv_weights(w1[:, :, :Csk2, :], Ws),
                          _banded_conv_weights(w1[:, :, Csk2:, :], Ws)], axis=1)
    B1 = (B1 * jnp.tile(s1, Ws)[None, None, :]).astype(compute_dtype)
    sh1 = jnp.tile(b1, Ws).reshape(1, Ws * Cout).astype(jnp.float32)

    s2, b2 = fold_bn(p['rb_c1_b'], *p['rb_bn1'])
    B2 = (_banded_conv_weights(p['rb_c1_w'], Ws)
          * jnp.tile(s2, Ws)[None, None, :]).astype(compute_dtype)
    sh2 = jnp.tile(b2, Ws).reshape(1, Ws * Cout).astype(jnp.float32)

    s3, b3 = fold_bn(p['rb_c2_b'], *p['rb_bn2'])
    B3 = (_banded_conv_weights(p['rb_c2_w'], Ws)
          * jnp.tile(s3, Ws)[None, None, :]).astype(compute_dtype)
    sh3 = jnp.tile(b3, Ws).reshape(1, Ws * Cout).astype(jnp.float32)

    B11 = _blockdiag_1x1_weights(p['rb_11_w'][0, 0], Ws).astype(compute_dtype)
    bias11 = jnp.tile(p['rb_11_b'], Ws).reshape(1, Ws * Cout).astype(jnp.float32)

    alphas = jnp.stack([p['l_prelu'], p['rb_p1'], p['rb_p2']]).astype(jnp.float32)

    out_slab = pl.pallas_call(
        functools.partial(_fused_tail_kernel, H=Hs, WSK=Ws * Csk2, WUP=Ws * Ch),
        out_shape=jax.ShapeDtypeStruct((N, Hs, Ws * Cout), jnp.float32),
        grid=(N,),
        in_specs=[
            pl.BlockSpec((1, Hs, Ws * Csk2), lambda n: (n, 0, 0)),
            pl.BlockSpec((1, Hs, Ws * Ch), lambda n: (n, 0, 0)),
            pl.BlockSpec(B1.shape, lambda n: (0, 0, 0)),
            pl.BlockSpec((1, Ws * Cout), lambda n: (0, 0)),
            pl.BlockSpec(B11.shape, lambda n: (0, 0)),
            pl.BlockSpec((1, Ws * Cout), lambda n: (0, 0)),
            pl.BlockSpec(B2.shape, lambda n: (0, 0, 0)),
            pl.BlockSpec((1, Ws * Cout), lambda n: (0, 0)),
            pl.BlockSpec(B3.shape, lambda n: (0, 0, 0)),
            pl.BlockSpec((1, Ws * Cout), lambda n: (0, 0)),
            pl.BlockSpec(memory_space=pltpu.MemorySpace.SMEM),
        ],
        out_specs=pl.BlockSpec((1, Hs, Ws * Cout), lambda n: (n, 0, 0)),
        scratch_shapes=[
            pltpu.VMEM((Hs + 2, Ws * (Csk2 + Ch)), compute_dtype),   # padded [skip|up] slab
            pltpu.VMEM((Hs + 2, Ws * Cout), compute_dtype),          # padded h / t slab
        ],
        compiler_params=cp,
    )(skip_slab, up_slab, B1, sh1, B11, bias11, B2, sh2, B3, sh3, alphas)

    return out_slab.reshape(N, Hs, Ws, Cout)


# ---------------------------------------------------------------------------
# Pure-JAX reference (same eval-mode semantics)
# ---------------------------------------------------------------------------
def _ref_conv(x, w, b, pad):
    y = lax.conv_general_dilated(x, w, (1, 1), ((pad, pad), (pad, pad)),
                                 dimension_numbers=('NHWC', 'HWIO', 'NHWC'),
                                 precision=lax.Precision.HIGHEST)
    return y + b.reshape(1, 1, 1, -1)


def _ref_bn(x, bn):
    g, b, m, v = bn
    return (x - m) / jnp.sqrt(v + _EPS) * g + b


def _ref_prelu(x, a):
    return jnp.where(x > 0, x, a * x)


def ref_forward(p, x, skip):
    N, Hin, Win, _ = x.shape
    Hs, Ws = skip.shape[1], skip.shape[2]
    op_h = Hs - (2 * Hin - 1)
    op_w = Ws - (2 * Win - 1)
    w_eq = jnp.transpose(jnp.flip(p['ct_w'], axis=(2, 3)), (2, 3, 0, 1))
    y = lax.conv_general_dilated(x, w_eq, (1, 1),
                                 ((1, 1 + op_h), (1, 1 + op_w)),
                                 lhs_dilation=(2, 2),
                                 dimension_numbers=('NHWC', 'HWIO', 'NHWC'),
                                 precision=lax.Precision.HIGHEST)
    y = y + p['ct_b'].reshape(1, 1, 1, -1)
    up = _ref_prelu(_ref_bn(y, p['bn0']), p['prelu0'])
    concat = jnp.concatenate([skip, up], axis=-1)
    h = _ref_prelu(_ref_bn(_ref_conv(concat, p['l_conv_w'], p['l_conv_b'], 1),
                           p['l_bn']), p['l_prelu'])
    res = _ref_conv(h, p['rb_11_w'], p['rb_11_b'], 0)
    t = _ref_prelu(_ref_bn(_ref_conv(h, p['rb_c1_w'], p['rb_c1_b'], 1),
                           p['rb_bn1']), p['rb_p1'])
    t = _ref_prelu(_ref_bn(_ref_conv(t, p['rb_c2_w'], p['rb_c2_b'], 1),
                           p['rb_bn2']), p['rb_p2'])
    return res + t


# ---------------------------------------------------------------------------
# Deterministic parameter init (synthetic, matching module shapes)
# ---------------------------------------------------------------------------
def init_params(key, in_chans, out_chans, skip_chans):
    half = in_chans // 2
    cat_c = half + skip_chans * 2
    ks = iter(jax.random.split(key, 32))

    def nrm(shape, scale=0.2):
        return scale * jax.random.normal(next(ks), shape, dtype=jnp.float32)

    def bn(c):
        return (1.0 + 0.1 * jax.random.normal(next(ks), (c,), dtype=jnp.float32),
                0.1 * jax.random.normal(next(ks), (c,), dtype=jnp.float32),
                0.1 * jax.random.normal(next(ks), (c,), dtype=jnp.float32),
                0.5 + jax.random.uniform(next(ks), (c,), dtype=jnp.float32))

    p = {}
    p['ct_w'] = nrm((in_chans, half, 3, 3))        # ConvTranspose2d weight (I, O, kH, kW)
    p['ct_b'] = nrm((half,), 0.1)
    p['bn0'] = bn(half)
    p['prelu0'] = jnp.float32(0.25)
    p['l_conv_w'] = nrm((3, 3, cat_c, out_chans))  # HWIO, channel order [skip, upsampled]
    p['l_conv_b'] = nrm((out_chans,), 0.1)
    p['l_bn'] = bn(out_chans)
    p['l_prelu'] = jnp.float32(0.2)
    p['rb_c1_w'] = nrm((3, 3, out_chans, out_chans))
    p['rb_c1_b'] = nrm((out_chans,), 0.1)
    p['rb_bn1'] = bn(out_chans)
    p['rb_p1'] = jnp.float32(0.3)
    p['rb_c2_w'] = nrm((3, 3, out_chans, out_chans))
    p['rb_c2_b'] = nrm((out_chans,), 0.1)
    p['rb_bn2'] = bn(out_chans)
    p['rb_p2'] = jnp.float32(0.15)
    p['rb_11_w'] = nrm((1, 1, out_chans, out_chans))
    p['rb_11_b'] = nrm((out_chans,), 0.1)
    return p


if __name__ == "__main__":
    in_chans, out_chans, skip_chans = 8, 8, 4
    N, Hin, Win = 2, 8, 8
    Hs, Ws = 2 * Hin, 2 * Win              # skip resolution (output_size of conv_1)

    key = jax.random.PRNGKey(0)
    kp, kx, ks = jax.random.split(key, 3)
    params = init_params(kp, in_chans, out_chans, skip_chans)
    x = jax.random.normal(kx, (N, Hin, Win, in_chans), jnp.float32)
    skip = jax.random.normal(ks, (N, Hs, Ws, skip_chans * 2), jnp.float32)

    ref = jax.block_until_ready(ref_forward(params, x, skip))

    # f32 MXU path: tight correctness check of the phase / banded formulation.
    out_f32 = jax.block_until_ready(
        conv_up_block_forward(params, x, skip, compute_dtype=jnp.float32))
    assert out_f32.shape == (N, Hs, Ws, out_chans), out_f32.shape
    np.testing.assert_allclose(np.asarray(out_f32), np.asarray(ref),
                               rtol=1e-3, atol=1e-3)

    # Default bf16 MXU fast path: scale-relative tolerance sized for bf16
    # operands/intermediates across the 5 fused convolutions.
    out = jax.block_until_ready(conv_up_block_forward(params, x, skip))
    out = jax.block_until_ready(out)
    assert out.shape == (N, Hs, Ws, out_chans), out.shape
    ref_np = np.asarray(ref)
    max_err = float(np.max(np.abs(np.asarray(out) - ref_np)))
    scale = float(np.max(np.abs(ref_np)))
    assert max_err <= 2e-2 * scale, (max_err, scale)

    print("KERNEL_OK")
</pallas_src>

<mosaic_0001>
module attributes {stable_mosaic.version = 11 : i64} {
  func.func @_upsample_phase_kernel(%arg0: i32, %arg1: memref<1x9x64xf32, #tpu.memory_space<vmem>>, %arg2: memref<2x64x128xf32, #tpu.memory_space<vmem>>, %arg3: memref<1x128xf32, #tpu.memory_space<vmem>>, %arg4: memref<1xf32, #tpu.memory_space<smem>>, %arg5: memref<1x8x128xf32, #tpu.memory_space<vmem>>) attributes {dimension_semantics = [#tpu.dimension_semantics<parallel>], iteration_bounds = array<i64: 2>, scalar_prefetch = 0 : i64, scratch_operands = 0 : i64, tpu.core_type = #tpu.core_type<tc>, window_params = [{transform_indices = @transform_0, window_bounds = array<i64: 1, 9, 64>}, {pipeline_mode = #tpu.pipeline_mode<synchronous>, transform_indices = @transform_1, window_bounds = array<i64: 2, 64, 128>}, {pipeline_mode = #tpu.pipeline_mode<synchronous>, transform_indices = @transform_2, window_bounds = array<i64: 1, 128>}, {transform_indices = @transform_3, window_bounds = array<i64: 1>}, {transform_indices = @transform_4, window_bounds = array<i64: 1, 8, 128>}]} {
    %c0 = arith.constant 0 : index
    %c0_0 = arith.constant 0 : index
    %c0_1 = arith.constant 0 : index
    %0 = vector.load %arg1[%c0, %c0_0, %c0_1] : memref<1x9x64xf32, #tpu.memory_space<vmem>>, vector<1x9x64xf32>
    %1 = vector.shape_cast %0 : vector<1x9x64xf32> to vector<9x64xf32>
    %2 = vector.extract_strided_slice %1 {offsets = [0, 0], sizes = [8, 64], strides = [1, 1]} : vector<9x64xf32> to vector<8x64xf32>
    %c0_2 = arith.constant 0 : index
    %c0_3 = arith.constant 0 : index
    %c0_4 = arith.constant 0 : index
    %3 = vector.load %arg2[%c0_2, %c0_3, %c0_4] : memref<2x64x128xf32, #tpu.memory_space<vmem>>, vector<1x64x128xf32>
    %4 = vector.shape_cast %3 : vector<1x64x128xf32> to vector<64x128xf32>
    %cst = arith.constant dense<0.000000e+00> : vector<8x128xf32>
    %5 = tpu.matmul %2, %4, %cst {dimension_numbers = #tpu.dot_dimension_numbers<[1], [0], [0], [1], [0, 0, 1, 1], [], []>, precision = #tpu.contract_precision<fp32>} : vector<8x64xf32>, vector<64x128xf32>, vector<8x128xf32> -> vector<8x128xf32>
    %6 = vector.extract_strided_slice %1 {offsets = [1, 0], sizes = [8, 64], strides = [1, 1]} : vector<9x64xf32> to vector<8x64xf32>
    %c1 = arith.constant 1 : index
    %c0_5 = arith.constant 0 : index
    %c0_6 = arith.constant 0 : index
    %7 = vector.load %arg2[%c1, %c0_5, %c0_6] : memref<2x64x128xf32, #tpu.memory_space<vmem>>, vector<1x64x128xf32>
    %8 = vector.shape_cast %7 : vector<1x64x128xf32> to vector<64x128xf32>
    %cst_7 = arith.constant dense<0.000000e+00> : vector<8x128xf32>
    %9 = tpu.matmul %6, %8, %cst_7 {dimension_numbers = #tpu.dot_dimension_numbers<[1], [0], [0], [1], [0, 0, 1, 1], [], []>, precision = #tpu.contract_precision<fp32>} : vector<8x64xf32>, vector<64x128xf32>, vector<8x128xf32> -> vector<8x128xf32>
    %10 = arith.addf %5, %9 : vector<8x128xf32>
    %c0_8 = arith.constant 0 : index
    %c0_9 = arith.constant 0 : index
    %11 = vector.load %arg3[%c0_8, %c0_9] : memref<1x128xf32, #tpu.memory_space<vmem>>, vector<1x128xf32>
    %12 = vector.broadcast %11 : vector<1x128xf32> to vector<8x128xf32>
    %13 = arith.addf %10, %12 : vector<8x128xf32>
    %c0_10 = arith.constant 0 : index
    %14 = memref.load %arg4[%c0_10] : memref<1xf32, #tpu.memory_space<smem>>
    %cst_11 = arith.constant 0.000000e+00 : f32
    %15 = vector.broadcast %cst_11 : f32 to vector<8x128xf32>
    %16 = arith.cmpf ogt, %13, %15 : vector<8x128xf32>
    %17 = vector.broadcast %14 : f32 to vector<8x128xf32>
    %18 = arith.mulf %17, %13 : vector<8x128xf32>
    %19 = arith.select %16, %13, %18 : vector<8x128xi1>, vector<8x128xf32>
    %c0_12 = arith.constant 0 : index
    %c0_13 = arith.constant 0 : index
    %c0_14 = arith.constant 0 : index
    %20 = vector.load %arg5[%c0_12, %c0_13, %c0_14] : memref<1x8x128xf32, #tpu.memory_space<vmem>>, vector<1x8x128xf32>
    %21 = vector.shape_cast %20 : vector<1x8x128xf32> to vector<8x128xf32>
    %22 = vector.shape_cast %19 : vector<8x128xf32> to vector<1x8x128xf32>
    tpu.vector_store %arg5[%c0_12, %c0_13, %c0_14], %22 {strides = array<i32>} : memref<1x8x128xf32, #tpu.memory_space<vmem>>, vector<1x8x128xf32>,
    return
  }
  func.func @transform_0(%arg0: i32) -> (i32, i32, i32) {
    %c0_i32 = arith.constant 0 : i32
    %c0_i32_0 = arith.constant 0 : i32
    %c0_i32_1 = arith.constant 0 : i32
    return %arg0, %c0_i32, %c0_i32_0 : i32, i32, i32
  }
  func.func @transform_1(%arg0: i32) -> (i32, i32, i32) {
    %c0_i32 = arith.constant 0 : i32
    %c0_i32_0 = arith.constant 0 : i32
    %c0_i32_1 = arith.constant 0 : i32
    %c0_i32_2 = arith.constant 0 : i32
    return %c0_i32, %c0_i32_0, %c0_i32_1 : i32, i32, i32
  }
  func.func @transform_2(%arg0: i32) -> (i32, i32) {
    %c0_i32 = arith.constant 0 : i32
    %c0_i32_0 = arith.constant 0 : i32
    %c0_i32_1 = arith.constant 0 : i32
    return %c0_i32, %c0_i32_0 : i32, i32
  }
  func.func @transform_3(%arg0: i32) -> i32 {
    %c0_i32 = arith.constant 0 : i32
    %c0_i32_0 = arith.constant 0 : i32
    return %c0_i32 : i32
  }
  func.func @transform_4(%arg0: i32) -> (i32, i32, i32) {
    %c0_i32 = arith.constant 0 : i32
    %c0_i32_0 = arith.constant 0 : i32
    %c0_i32_1 = arith.constant 0 : i32
    return %arg0, %c0_i32, %c0_i32_0 : i32, i32, i32
  }
}

</mosaic_0001>

<llo_original>
// kernel: tpu_custom_call.1
$region0: #{tpu_custom_call.1}
  #allocation0 [shape = 'u32[]', space=smem, size = 0x4, offset = 0x4, fixed_abs, tag = 'smem constant byte address 0x4 - core index']
  #allocation1 [shape = 'u32[144,128]{1,0:T(1,128)}', space=vmem, size = 0x12000, scoped, tag = 'internal scratch']
  #allocation2 [shape = 'f32[1]{0:T(128)S(6)}', space=smem, size = 0x200, scoped, tag = 'scoped memory for tpu_custom_call.1']
  %s0 = inlined_call_operand.vmem [shape: f32[2,9,64], index: 0, kind: input, shape index: {}]
  %s1 = inlined_call_operand.hbm [shape: f32[2,64,128], index: 1, kind: input, shape index: {}]
  %s2 = inlined_call_operand.vmem [shape: f32[1,128], index: 2, kind: input, shape index: {}]
  %s3 = inlined_call_operand.<no memory space> [shape: f32[1], index: 3, kind: input, shape index: {}]
  %s4 = inlined_call_operand.hbm [shape: f32[2,8,128], index: 4, kind: output, shape index: {}]
  %s5 = sld [smem:[#allocation0]]
  $region53: #{tpu_custom_call.1} parent=0
    _
  %s7 = ssub.s32 1, %s5
  %s8 = scalar_select 0, %s7, %s5
  %9 = sst [smem:[#allocation2]] %s3
  $region1: #{tpu_custom_call.1} parent=0
    #allocation3 [shape = 'u8[65536]{0}', space=vmem, size = 0x10000, scoped, tag = 'input window, operand 1, single buffered']
    #allocation4 [shape = 's32[2]{0}', space=sflag, size = 0x8, scoped, tag = 'scoped memory for tpu_custom_call.1']
    #allocation5 [shape = 's32[2]{0}', space=sflag, size = 0x8, scoped, tag = 'scoped memory for tpu_custom_call.1']
    #allocation6 [shape = 'u8[8192]{0}', space=vmem, size = 0x2000, scoped, tag = 'output window, operand 0']
    %10 = vsyncpa [#allocation4], 0
    %11 = vsyncpa [#allocation5], 0
    %s12 = scalar_lea.sflag [#allocation5], 1
    %13 = vsyncpa %s12, 0
    loop: start=0, step=1, limit=4
    $region2: #{tpu_custom_call.1} parent=1 // loop_pre_header
      _
    $region3: #{tpu_custom_call.1} parent=1 // loop_header
      %s15 = sphi 0, %s19
      %p16 = scmp.ge.s32.totalorder %s15, 4
      %s25 = sphi 0, %s27
      %s28 = sphi 0, %s25
      %s29 = sphi 0, %s28
      %s45 = sphi 0, %s29
      %s49 = sphi 0, %s49
      %s51 = sphi 0, %s49
      %s52 = sphi 0, %s51
      %s66 = sphi 0, %s52
      %s70 = sphi 0, %s70
      %s72 = sphi 0, %s70
      %s73 = sphi 0, %s72
      %s87 = sphi 0, %s73
      %s91 = sphi 0, %s91
      %s93 = sphi 0, %s91
      %s94 = sphi 0, %s93
      %s108 = sphi 0, %s94
      %s114 = sphi 0, %s116
      %s117 = sphi 0, %s114
      %s118 = sphi 0, %s117
      %s134 = sphi 0, %s118
    $region4: #{tpu_custom_call.1} parent=1 // loop_header_branch
      %18 = sbr.rel (%p16) target = $region8
    $region5: #{tpu_custom_call.1} parent=1 // loop_body
      %s20 = ssub.s32 %s15, 1
      %s21 = ssub.s32 %s15, 2
      %s22 = sadd.s32 %s15, 1
      %s23 = ssub.s32 %s15, %s22
      %p24 = scmp.eq.s32.totalorder %s23, 0
      %s26 = sadd.s32 %s25, 1
      %s27 = scalar_select %p24, %s25, %s26
      %p30 = pneg %p24
      %p31 = scmp.eq.s32.totalorder %s15, 1
      %p32 = por %p30, %p31
      %p33 = scmp.ne.s32.totalorder %s25, %s28
      %p34 = scmp.eq.s32.totalorder %s15, 0
      %p35 = por %p33, %p34
      %p36 = scmp.ne.s32.totalorder %s25, %s28
      %p37 = scmp.eq.s32.totalorder %s20, 1
      %p38 = por %p36, %p37
      %p39 = scmp.ne.s32.totalorder %s28, %s29
      %p40 = scmp.eq.s32.totalorder %s20, 0
      %p41 = por %p39, %p40
      %p42 = scmp.ne.s32.totalorder %s28, %s29
      %p43 = scmp.eq.s32.totalorder %s21, 1
      %p44 = por %p42, %p43
      %p46 = scmp.ne.s32.totalorder %s29, %s45
      %p47 = scmp.eq.s32.totalorder %s21, 0
      %p48 = por %p46, %p47
      %s50 = sadd.s32 %s49, 1
      %p53 = scmp.eq.s32.totalorder %s15, 1
      %p54 = scmp.ne.s32.totalorder %s49, %s51
      %p55 = scmp.eq.s32.totalorder %s15, 0
      %p56 = por %p54, %p55
      %p57 = scmp.ne.s32.totalorder %s49, %s51
      %p58 = scmp.eq.s32.totalorder %s20, 1
      %p59 = por %p57, %p58
      %p60 = scmp.ne.s32.totalorder %s51, %s52
      %p61 = scmp.eq.s32.totalorder %s20, 0
      %p62 = por %p60, %p61
      %p63 = scmp.ne.s32.totalorder %s51, %s52
      %p64 = scmp.eq.s32.totalorder %s21, 1
      %p65 = por %p63, %p64
      %p67 = scmp.ne.s32.totalorder %s52, %s66
      %p68 = scmp.eq.s32.totalorder %s21, 0
      %p69 = por %p67, %p68
      %s71 = sadd.s32 %s70, 1
      %p74 = scmp.eq.s32.totalorder %s15, 1
      %p75 = scmp.ne.s32.totalorder %s70, %s72
      %p76 = scmp.eq.s32.totalorder %s15, 0
      %p77 = por %p75, %p76
      %p78 = scmp.ne.s32.totalorder %s70, %s72
      %p79 = scmp.eq.s32.totalorder %s20, 1
      %p80 = por %p78, %p79
      %p81 = scmp.ne.s32.totalorder %s72, %s73
      %p82 = scmp.eq.s32.totalorder %s20, 0
      %p83 = por %p81, %p82
      %p84 = scmp.ne.s32.totalorder %s72, %s73
      %p85 = scmp.eq.s32.totalorder %s21, 1
      %p86 = por %p84, %p85
      %p88 = scmp.ne.s32.totalorder %s73, %s87
      %p89 = scmp.eq.s32.totalorder %s21, 0
      %p90 = por %p88, %p89
      %s92 = sadd.s32 %s91, 1
      %p95 = scmp.eq.s32.totalorder %s15, 1
      %p96 = scmp.ne.s32.totalorder %s91, %s93
      %p97 = scmp.eq.s32.totalorder %s15, 0
      %p98 = por %p96, %p97
      %p99 = scmp.ne.s32.totalorder %s91, %s93
      %p100 = scmp.eq.s32.totalorder %s20, 1
      %p101 = por %p99, %p100
      %p102 = scmp.ne.s32.totalorder %s93, %s94
      %p103 = scmp.eq.s32.totalorder %s20, 0
      %p104 = por %p102, %p103
      %p105 = scmp.ne.s32.totalorder %s93, %s94
      %p106 = scmp.eq.s32.totalorder %s21, 1
      %p107 = por %p105, %p106
      %p109 = scmp.ne.s32.totalorder %s94, %s108
      %p110 = scmp.eq.s32.totalorder %s21, 0
      %p111 = por %p109, %p110
      %s112 = ssub.s32 %s15, %s22
      %p113 = scmp.eq.s32.totalorder %s112, 0
      %s115 = sadd.s32 %s114, 1
      %s116 = scalar_select %p113, %s114, %s115
      %p119 = pneg %p113
      %p120 = scmp.eq.s32.totalorder %s15, 1
      %p121 = por %p119, %p120
      %p122 = scmp.ne.s32.totalorder %s114, %s117
      %p123 = scmp.eq.s32.totalorder %s15, 0
      %p124 = por %p122, %p123
      %p125 = scmp.ne.s32.totalorder %s114, %s117
      %p126 = scmp.eq.s32.totalorder %s20, 1
      %p127 = por %p125, %p126
      %p128 = scmp.ne.s32.totalorder %s117, %s118
      %p129 = scmp.eq.s32.totalorder %s20, 0
      %p130 = por %p128, %p129
      %p131 = scmp.ne.s32.totalorder %s117, %s118
      %p132 = scmp.eq.s32.totalorder %s21, 1
      %p133 = por %p131, %p132
      %p135 = scmp.ne.s32.totalorder %s118, %s134
      %p136 = scmp.eq.s32.totalorder %s21, 0
      %p137 = por %p135, %p136
      %p138 = scmp.le.s32.totalorder 1, %s15
      %p139 = scmp.lt.s32.totalorder %s15, 3
      %p140 = pnand %p138, %p139
      %p141 = pneg %p140
      // Predicated region
      $region9: #{tpu_custom_call.1} parent=5 // pred_check
        _
      $region10: #{tpu_custom_call.1} parent=5 // pred_check_branch
        %143 = sbr.rel (%p140) target = $region12
      $region11: #{tpu_custom_call.1} parent=5 // pred_region
        %s144 = ssub.s32 %s15, 1
        // Predicated region
        $region13: #{tpu_custom_call.1} parent=11 // pred_check
          %p145 = pneg %p62
        $region14: #{tpu_custom_call.1} parent=11 // pred_check_branch
          %147 = sbr.rel (%p145) target = $region16
        $region15: #{tpu_custom_call.1} parent=11 // pred_region
          %s149 = ssub.s32 2048, 2048
          %150 = vsyncadd [#allocation4], %s149
          %s151 = sshll.u32 [#allocation3], 4
          %s152 = int_to_ptr.vmem [resolvable:$true] %s151
          %157 = dma.hbm_to_vmem [thread:$0]  %s1, 2048, %s152, [#allocation4], 128, 128, 8
        $region16: #{tpu_custom_call.1} parent=11 // pred_fallthru
          _
        // Predicated region
        $region17: #{tpu_custom_call.1} parent=11 // pred_check
          %p158 = pneg %p83
        $region18: #{tpu_custom_call.1} parent=11 // pred_check_branch
          %160 = sbr.rel (%p158) target = $region20
        $region19: #{tpu_custom_call.1} parent=11 // pred_region
          _
        $region20: #{tpu_custom_call.1} parent=11 // pred_fallthru
          _
        // Predicated region
        $region21: #{tpu_custom_call.1} parent=11 // pred_check
          %p161 = pneg %p104
        $region22: #{tpu_custom_call.1} parent=11 // pred_check_branch
          %163 = sbr.rel (%p161) target = $region24
        $region23: #{tpu_custom_call.1} parent=11 // pred_region
          _
        $region24: #{tpu_custom_call.1} parent=11 // pred_fallthru
          _
      $region12: #{tpu_custom_call.1} parent=5 // pred_fallthru
        _
      %p164 = scmp.lt.s32.totalorder %s15, 2
      // Predicated region
      $region25: #{tpu_custom_call.1} parent=5 // pred_check
        %p165 = pneg %p164
      $region26: #{tpu_custom_call.1} parent=5 // pred_check_branch
        %167 = sbr.rel (%p165) target = $region28
      $region27: #{tpu_custom_call.1} parent=5 // pred_region
        // Predicated region
        $region29: #{tpu_custom_call.1} parent=27 // pred_check
          %p168 = pneg %p35
        $region30: #{tpu_custom_call.1} parent=27 // pred_check_branch
          %170 = sbr.rel (%p168) target = $region32
        $region31: #{tpu_custom_call.1} parent=27 // pred_region
          %p171 = scmp.lt.s32.totalorder %s15, 1
          %s172 = scalar_select %p171, %s15, 1
          %s173 = smul.addr %s172, 2
          %s174 = smul.addr %s173, 8
          %s175 = scalar_lea.vmem %s0, %s174
        $region32: #{tpu_custom_call.1} parent=27 // pred_fallthru
          _
      $region28: #{tpu_custom_call.1} parent=5 // pred_fallthru
        _
      %p176 = scmp.le.s32.totalorder 1, %s15
      %p177 = scmp.lt.s32.totalorder %s15, 3
      %p178 = pnand %p176, %p177
      %p179 = pneg %p178
      // Predicated region
      $region33: #{tpu_custom_call.1} parent=5 // pred_check
        _
      $region34: #{tpu_custom_call.1} parent=5 // pred_check_branch
        %181 = sbr.rel (%p178) target = $region36
      $region35: #{tpu_custom_call.1} parent=5 // pred_region
        %s182 = ssub.s32 %s15, 1
        // Predicated region
        $region37: #{tpu_custom_call.1} parent=35 // pred_check
          %p183 = pneg %p62
        $region38: #{tpu_custom_call.1} parent=35 // pred_check_branch
          %185 = sbr.rel (%p183) target = $region40
        $region39: #{tpu_custom_call.1} parent=35 // pred_region
          %186 = dma.done [#allocation4], 2048
        $region40: #{tpu_custom_call.1} parent=35 // pred_fallthru
          _
        %p187 = scmp.lt.s32.totalorder %s20, 1
        %s188 = scalar_select %p187, %s20, 1
        %s189 = smul.addr %s188, 2
        %s190 = smul.addr %s189, 8
        %s191 = scalar_lea.vmem %s0, %s190
        %p192 = pneg %p41
        %p193 = pneg %p38
        %p194 = pneg %p62
        %p195 = pneg %p59
        %p196 = pneg %p83
        %p197 = pneg %p80
        %p198 = pneg %p104
        %p199 = pneg %p101
        %p200 = pneg %p130
        %p201 = pneg %p127
        %s202 = sand.u32 %s117, 1
        %s203 = scalar_lea.sflag [#allocation5], %s202
        %s204 = sand.u32 %s117, 1
        %s205 = smul.addr %s204, 8
        %s206 = scalar_lea.vmem [#allocation6], %s205
        %p207 = scmp.lt.s32.totalorder %s20, 1
        %s208 = scalar_select %p207, %s20, 1
        %s209 = smul.addr %s208, 2
        %s210 = smul.addr %s209, 8
        %s211 = scalar_lea.vmem %s0, %s210
        %v212 = vld [vmem:[%s211] sm:$0xff]
        %v213 = vld [vmem:[%s211 + $0x8] sm:$0x1]
        %v214 = vld [vmem:[#allocation3] sm:$0xff]
        %v215 = vld [vmem:[#allocation3 + $0x8] sm:$0xff]
        %v216 = vld [vmem:[#allocation3 + $0x10] sm:$0xff]
        %v217 = vld [vmem:[#allocation3 + $0x18] sm:$0xff]
        %v218 = vld [vmem:[#allocation3 + $0x20] sm:$0xff]
        %v219 = vld [vmem:[#allocation3 + $0x28] sm:$0xff]
        %v220 = vld [vmem:[#allocation3 + $0x30] sm:$0xff]
        %v221 = vld [vmem:[#allocation3 + $0x38] sm:$0xff]
        %s222 = scalar_lea.vmem [#allocation3], 64
        %v223 = vld [vmem:[%s222] sm:$0xff]
        %v224 = vld [vmem:[%s222 + $0x8] sm:$0xff]
        %v225 = vld [vmem:[%s222 + $0x10] sm:$0xff]
        %v226 = vld [vmem:[%s222 + $0x18] sm:$0xff]
        %v227 = vld [vmem:[%s222 + $0x20] sm:$0xff]
        %v228 = vld [vmem:[%s222 + $0x28] sm:$0xff]
        %v229 = vld [vmem:[%s222 + $0x30] sm:$0xff]
        %v230 = vld [vmem:[%s222 + $0x38] sm:$0xff]
        %vm233 = vcmask 1046528
        %v234 = vrot.slane %v212, 1
        %v235 = vrot.slane %v213, 1
        %v236 = vsel %vm233, %v234, %v235
        %vm237 = vcmask 523264
        %v238 = vsel %vm237, %v236, 0
        %240 = vmatprep.subr.mxu0 0.0
        %v241 = vand.u32 %v223, 4294901760
        %242 = vmatpush1.msra.mxu0 %v241
        %243 = vmatprep.subr.mxu0 0.0
        %v244 = vand.u32 %v224, 4294901760
        %245 = vmatpush1.msra.mxu0 %v244
        %246 = vmatprep.subr.mxu0 0.0
        %v247 = vand.u32 %v225, 4294901760
        %248 = vmatpush1.msra.mxu0 %v247
        %249 = vmatprep.subr.mxu0 0.0
        %v250 = vand.u32 %v226, 4294901760
        %251 = vmatpush1.msra.mxu0 %v250
        %252 = vmatprep.subr.mxu0 0.0
        %v253 = vand.u32 %v227, 4294901760
        %254 = vmatpush1.msra.mxu0 %v253
        %255 = vmatprep.subr.mxu0 0.0
        %v256 = vand.u32 %v228, 4294901760
        %257 = vmatpush1.msra.mxu0 %v256
        %258 = vmatprep.subr.mxu0 0.0
        %v259 = vand.u32 %v229, 4294901760
        %260 = vmatpush1.msra.mxu0 %v259
        %261 = vmatprep.subr.mxu0 0.0
        %v262 = vand.u32 %v230, 4294901760
        %263 = vmatpush1.msra.mxu0 %v262
        %264 = vmatprep.subr.mxu0 0.0
        %265 = vmatpush1.msra.mxu0 0.0
        %266 = vmatprep.subr.mxu0 0.0
        %267 = vmatpush1.msra.mxu0 0.0
        %268 = vmatprep.subr.mxu0 0.0
        %269 = vmatpush1.msra.mxu0 0.0
        %270 = vmatprep.subr.mxu0 0.0
        %271 = vmatpush1.msra.mxu0 0.0
        %272 = vmatprep.subr.mxu0 0.0
        %273 = vmatpush1.msra.mxu0 0.0
        %274 = vmatprep.subr.mxu0 0.0
        %275 = vmatpush1.msra.mxu0 0.0
        %276 = vmatprep.subr.mxu0 0.0
        %277 = vmatpush1.msra.mxu0 0.0
        %278 = vmatprep.subr.mxu0 0.0
        %279 = vmatpush1.msra.mxu0 0.0
        %280 = vmatprep.subr.mxu0 0.0
        %281 = vmatpush1.msra.mxu0 0.0
        %282 = vmatprep.subr.mxu0 0.0
        %283 = vmatpush1.msra.mxu0 0.0
        %284 = vmatprep.subr.mxu0 0.0
        %285 = vmatpush1.msra.mxu0 0.0
        %286 = vmatprep.subr.mxu0 0.0
        %287 = vmatpush1.msra.mxu0 0.0
        %288 = vmatprep.subr.mxu0 0.0
        %289 = vmatpush1.msra.mxu0 0.0
        %290 = vmatprep.subr.mxu0 0.0
        %291 = vmatpush1.msra.mxu0 0.0
        %292 = vmatprep.subr.mxu0 0.0
        %293 = vmatpush1.msra.mxu0 0.0
        %294 = vmatprep.subr.mxu0 0.0
        %295 = vmatpush1.msra.mxu0 0.0
        %296 = vmatprep.subr.mxu0 0.0
        %297 = vmatpush1.msra.mxu0 0.0
        %298 = vmatprep.subr.mxu0 0.0
        %299 = vmatpush1.msra.mxu0 0.0
        %300 = vmatprep.subr.mxu0 0.0
        %301 = vmatpush1.msra.mxu0 0.0
        %302 = vmatprep.subr.mxu0 0.0
        %303 = vmatpush1.msra.mxu0 0.0
        %304 = vmatprep.subr.mxu0 0.0
        %305 = vmatpush1.msra.mxu0 0.0
        %306 = vmatprep.subr.mxu0 0.0
        %307 = vmatpush1.msra.mxu0 0.0
        %308 = vmatprep.subr.mxu0 0.0
        %309 = vmatpush1.msra.mxu0 0.0
        %310 = vmatprep.subr.mxu0 0.0
        %311 = vmatpush1.msra.mxu0 0.0
        %312 = vmatprep.mubr.f32.mxu0 0.0
        %v313 = vand.u32 %v238, 4294901760
        %v314 = vsub.f32 %v238, %v313
        %v315 = vand.u32 %v314, 4294901760
        %v316 = vsub.f32 %v314, %v315
        %v317 = vand.u32 %v316, 4294901760
        %318 = vmatmul.mubr.f32.gmra.mrb[0].mxu0 %v317
        %v319 = vpop.f32.mrb[0].mxu0
        %v320 = vadd.f32 0.0, %v319
        %v321 = vpop.f32.mrb[0].mxu0
        %322 = vdwg.mxu0
        %323 = vmatprep.subr.mxu0 0.0
        %v324 = vand.u32 %v223, 4294901760
        %v325 = vsub.f32 %v223, %v324
        %v326 = vand.u32 %v325, 4294901760
        %v327 = vsub.f32 %v325, %v326
        %v328 = vand.u32 %v327, 4294901760
        %329 = vmatpush1.msra.mxu0 %v328
        %330 = vmatprep.subr.mxu0 0.0
        %v331 = vand.u32 %v224, 4294901760
        %v332 = vsub.f32 %v224, %v331
        %v333 = vand.u32 %v332, 4294901760
        %v334 = vsub.f32 %v332, %v333
        %v335 = vand.u32 %v334, 4294901760
        %336 = vmatpush1.msra.mxu0 %v335
        %337 = vmatprep.subr.mxu0 0.0
        %v338 = vand.u32 %v225, 4294901760
        %v339 = vsub.f32 %v225, %v338
        %v340 = vand.u32 %v339, 4294901760
        %v341 = vsub.f32 %v339, %v340
        %v342 = vand.u32 %v341, 4294901760
        %343 = vmatpush1.msra.mxu0 %v342
        %344 = vmatprep.subr.mxu0 0.0
        %v345 = vand.u32 %v226, 4294901760
        %v346 = vsub.f32 %v226, %v345
        %v347 = vand.u32 %v346, 4294901760
        %v348 = vsub.f32 %v346, %v347
        %v349 = vand.u32 %v348, 4294901760
        %350 = vmatpush1.msra.mxu0 %v349
        %351 = vmatprep.subr.mxu0 0.0
        %v352 = vand.u32 %v227, 4294901760
        %v353 = vsub.f32 %v227, %v352
        %v354 = vand.u32 %v353, 4294901760
        %v355 = vsub.f32 %v353, %v354
        %v356 = vand.u32 %v355, 4294901760
        %357 = vmatpush1.msra.mxu0 %v356
        %358 = vmatprep.subr.mxu0 0.0
        %v359 = vand.u32 %v228, 4294901760
        %v360 = vsub.f32 %v228, %v359
        %v361 = vand.u32 %v360, 4294901760
        %v362 = vsub.f32 %v360, %v361
        %v363 = vand.u32 %v362, 4294901760
        %364 = vmatpush1.msra.mxu0 %v363
        %365 = vmatprep.subr.mxu0 0.0
        %v366 = vand.u32 %v229, 4294901760
        %v367 = vsub.f32 %v229, %v366
        %v368 = vand.u32 %v367, 4294901760
        %v369 = vsub.f32 %v367, %v368
        %v370 = vand.u32 %v369, 4294901760
        %371 = vmatpush1.msra.mxu0 %v370
        %372 = vmatprep.subr.mxu0 0.0
        %v373 = vand.u32 %v230, 4294901760
        %v374 = vsub.f32 %v230, %v373
        %v375 = vand.u32 %v374, 4294901760
        %v376 = vsub.f32 %v374, %v375
        %v377 = vand.u32 %v376, 4294901760
        %378 = vmatpush1.msra.mxu0 %v377
        %379 = vmatprep.subr.mxu0 0.0
        %380 = vmatpush1.msra.mxu0 0.0
        %381 = vmatprep.subr.mxu0 0.0
        %382 = vmatpush1.msra.mxu0 0.0
        %383 = vmatprep.subr.mxu0 0.0
        %384 = vmatpush1.msra.mxu0 0.0
        %385 = vmatprep.subr.mxu0 0.0
        %386 = vmatpush1.msra.mxu0 0.0
        %387 = vmatprep.subr.mxu0 0.0
        %388 = vmatpush1.msra.mxu0 0.0
        %389 = vmatprep.subr.mxu0 0.0
        %390 = vmatpush1.msra.mxu0 0.0
        %391 = vmatprep.subr.mxu0 0.0
        %392 = vmatpush1.msra.mxu0 0.0
        %393 = vmatprep.subr.mxu0 0.0
        %394 = vmatpush1.msra.mxu0 0.0
        %395 = vmatprep.subr.mxu0 0.0
        %396 = vmatpush1.msra.mxu0 0.0
        %397 = vmatprep.subr.mxu0 0.0
        %398 = vmatpush1.msra.mxu0 0.0
        %399 = vmatprep.subr.mxu0 0.0
        %400 = vmatpush1.msra.mxu0 0.0
        %401 = vmatprep.subr.mxu0 0.0
        %402 = vmatpush1.msra.mxu0 0.0
        %403 = vmatprep.subr.mxu0 0.0
        %404 = vmatpush1.msra.mxu0 0.0
        %405 = vmatprep.subr.mxu0 0.0
        %406 = vmatpush1.msra.mxu0 0.0
        %407 = vmatprep.subr.mxu0 0.0
        %408 = vmatpush1.msra.mxu0 0.0
        %409 = vmatprep.subr.mxu0 0.0
        %410 = vmatpush1.msra.mxu0 0.0
        %411 = vmatprep.subr.mxu0 0.0
        %412 = vmatpush1.msra.mxu0 0.0
        %413 = vmatprep.subr.mxu0 0.0
        %414 = vmatpush1.msra.mxu0 0.0
        %415 = vmatprep.subr.mxu0 0.0
        %416 = vmatpush1.msra.mxu0 0.0
        %417 = vmatprep.subr.mxu0 0.0
        %418 = vmatpush1.msra.mxu0 0.0
        %419 = vmatprep.subr.mxu0 0.0
        %420 = vmatpush1.msra.mxu0 0.0
        %421 = vmatprep.subr.mxu0 0.0
        %422 = vmatpush1.msra.mxu0 0.0
        %423 = vmatprep.subr.mxu0 0.0
        %424 = vmatpush1.msra.mxu0 0.0
        %425 = vmatprep.subr.mxu0 0.0
        %426 = vmatpush1.msra.mxu0 0.0
        %427 = vmatprep.mubr.f32.mxu0 0.0
        %v428 = vand.u32 %v238, 4294901760
        %429 = vmatmul.mubr.f32.gmra.mrb[0].mxu0 %v428
        %v430 = vpop.f32.mrb[0].mxu0
        %v431 = vadd.f32 %v320, %v430
        %v432 = vpop.f32.mrb[0].mxu0
        %433 = vdwg.mxu0
        %434 = vmatprep.subr.mxu0 0.0
        %v435 = vand.u32 %v223, 4294901760
        %v436 = vsub.f32 %v223, %v435
        %437 = vmatpush1.msra.mxu0 %v436
        %438 = vmatprep.subr.mxu0 0.0
        %v439 = vand.u32 %v224, 4294901760
        %v440 = vsub.f32 %v224, %v439
        %441 = vmatpush1.msra.mxu0 %v440
        %442 = vmatprep.subr.mxu0 0.0
        %v443 = vand.u32 %v225, 4294901760
        %v444 = vsub.f32 %v225, %v443
        %445 = vmatpush1.msra.mxu0 %v444
        %446 = vmatprep.subr.mxu0 0.0
        %v447 = vand.u32 %v226, 4294901760
        %v448 = vsub.f32 %v226, %v447
        %449 = vmatpush1.msra.mxu0 %v448
        %450 = vmatprep.subr.mxu0 0.0
        %v451 = vand.u32 %v227, 4294901760
        %v452 = vsub.f32 %v227, %v451
        %453 = vmatpush1.msra.mxu0 %v452
        %454 = vmatprep.subr.mxu0 0.0
        %v455 = vand.u32 %v228, 4294901760
        %v456 = vsub.f32 %v228, %v455
        %457 = vmatpush1.msra.mxu0 %v456
        %458 = vmatprep.subr.mxu0 0.0
        %v459 = vand.u32 %v229, 4294901760
        %v460 = vsub.f32 %v229, %v459
        %461 = vmatpush1.msra.mxu0 %v460
        %462 = vmatprep.subr.mxu0 0.0
        %v463 = vand.u32 %v230, 4294901760
        %v464 = vsub.f32 %v230, %v463
        %465 = vmatpush1.msra.mxu0 %v464
        %466 = vmatprep.subr.mxu0 0.0
        %467 = vmatpush1.msra.mxu0 0.0
        %468 = vmatprep.subr.mxu0 0.0
        %469 = vmatpush1.msra.mxu0 0.0
        %470 = vmatprep.subr.mxu0 0.0
        %471 = vmatpush1.msra.mxu0 0.0
        %472 = vmatprep.subr.mxu0 0.0
        %473 = vmatpush1.msra.mxu0 0.0
        %474 = vmatprep.subr.mxu0 0.0
        %475 = vmatpush1.msra.mxu0 0.0
        %476 = vmatprep.subr.mxu0 0.0
        %477 = vmatpush1.msra.mxu0 0.0
        %478 = vmatprep.subr.mxu0 0.0
        %479 = vmatpush1.msra.mxu0 0.0
        %480 = vmatprep.subr.mxu0 0.0
        %481 = vmatpush1.msra.mxu0 0.0
        %482 = vmatprep.subr.mxu0 0.0
        %483 = vmatpush1.msra.mxu0 0.0
        %484 = vmatprep.subr.mxu0 0.0
        %485 = vmatpush1.msra.mxu0 0.0
        %486 = vmatprep.subr.mxu0 0.0
        %487 = vmatpush1.msra.mxu0 0.0
        %488 = vmatprep.subr.mxu0 0.0
        %489 = vmatpush1.msra.mxu0 0.0
        %490 = vmatprep.subr.mxu0 0.0
        %491 = vmatpush1.msra.mxu0 0.0
        %492 = vmatprep.subr.mxu0 0.0
        %493 = vmatpush1.msra.mxu0 0.0
        %494 = vmatprep.subr.mxu0 0.0
        %495 = vmatpush1.msra.mxu0 0.0
        %496 = vmatprep.subr.mxu0 0.0
        %497 = vmatpush1.msra.mxu0 0.0
        %498 = vmatprep.subr.mxu0 0.0
        %499 = vmatpush1.msra.mxu0 0.0
        %500 = vmatprep.subr.mxu0 0.0
        %501 = vmatpush1.msra.mxu0 0.0
        %502 = vmatprep.subr.mxu0 0.0
        %503 = vmatpush1.msra.mxu0 0.0
        %504 = vmatprep.subr.mxu0 0.0
        %505 = vmatpush1.msra.mxu0 0.0
        %506 = vmatprep.subr.mxu0 0.0
        %507 = vmatpush1.msra.mxu0 0.0
        %508 = vmatprep.subr.mxu0 0.0
        %509 = vmatpush1.msra.mxu0 0.0
        %510 = vmatprep.subr.mxu0 0.0
        %511 = vmatpush1.msra.mxu0 0.0
        %512 = vmatprep.subr.mxu0 0.0
        %513 = vmatpush1.msra.mxu0 0.0
        %514 = vmatprep.mubr.f32.mxu0 0.0
        %v515 = vand.u32 %v238, 4294901760
        %v516 = vsub.f32 %v238, %v515
        %517 = vmatmul.mubr.f32.gmra.mrb[0].mxu0 %v516
        %v518 = vpop.f32.mrb[0].mxu0
        %v519 = vadd.f32 %v431, %v518
        %v520 = vpop.f32.mrb[0].mxu0
        %521 = vdwg.mxu0
        %522 = vmatprep.subr.mxu0 0.0
        %v523 = vand.u32 %v223, 4294901760
        %524 = vmatpush1.msra.mxu0 %v523
        %525 = vmatprep.subr.mxu0 0.0
        %v526 = vand.u32 %v224, 4294901760
        %527 = vmatpush1.msra.mxu0 %v526
        %528 = vmatprep.subr.mxu0 0.0
        %v529 = vand.u32 %v225, 4294901760
        %530 = vmatpush1.msra.mxu0 %v529
        %531 = vmatprep.subr.mxu0 0.0
        %v532 = vand.u32 %v226, 4294901760
        %533 = vmatpush1.msra.mxu0 %v532
        %534 = vmatprep.subr.mxu0 0.0
        %v535 = vand.u32 %v227, 4294901760
        %536 = vmatpush1.msra.mxu0 %v535
        %537 = vmatprep.subr.mxu0 0.0
        %v538 = vand.u32 %v228, 4294901760
        %539 = vmatpush1.msra.mxu0 %v538
        %540 = vmatprep.subr.mxu0 0.0
        %v541 = vand.u32 %v229, 4294901760
        %542 = vmatpush1.msra.mxu0 %v541
        %543 = vmatprep.subr.mxu0 0.0
        %v544 = vand.u32 %v230, 4294901760
        %545 = vmatpush1.msra.mxu0 %v544
        %546 = vmatprep.subr.mxu0 0.0
        %547 = vmatpush1.msra.mxu0 0.0
        %548 = vmatprep.subr.mxu0 0.0
        %549 = vmatpush1.msra.mxu0 0.0
        %550 = vmatprep.subr.mxu0 0.0
        %551 = vmatpush1.msra.mxu0 0.0
        %552 = vmatprep.subr.mxu0 0.0
        %553 = vmatpush1.msra.mxu0 0.0
        %554 = vmatprep.subr.mxu0 0.0
        %555 = vmatpush1.msra.mxu0 0.0
        %556 = vmatprep.subr.mxu0 0.0
        %557 = vmatpush1.msra.mxu0 0.0
        %558 = vmatprep.subr.mxu0 0.0
        %559 = vmatpush1.msra.mxu0 0.0
        %560 = vmatprep.subr.mxu0 0.0
        %561 = vmatpush1.msra.mxu0 0.0
        %562 = vmatprep.subr.mxu0 0.0
        %563 = vmatpush1.msra.mxu0 0.0
        %564 = vmatprep.subr.mxu0 0.0
        %565 = vmatpush1.msra.mxu0 0.0
        %566 = vmatprep.subr.mxu0 0.0
        %567 = vmatpush1.msra.mxu0 0.0
        %568 = vmatprep.subr.mxu0 0.0
        %569 = vmatpush1.msra.mxu0 0.0
        %570 = vmatprep.subr.mxu0 0.0
        %571 = vmatpush1.msra.mxu0 0.0
        %572 = vmatprep.subr.mxu0 0.0
        %573 = vmatpush1.msra.mxu0 0.0
        %574 = vmatprep.subr.mxu0 0.0
        %575 = vmatpush1.msra.mxu0 0.0
        %576 = vmatprep.subr.mxu0 0.0
        %577 = vmatpush1.msra.mxu0 0.0
        %578 = vmatprep.subr.mxu0 0.0
        %579 = vmatpush1.msra.mxu0 0.0
        %580 = vmatprep.subr.mxu0 0.0
        %581 = vmatpush1.msra.mxu0 0.0
        %582 = vmatprep.subr.mxu0 0.0
        %583 = vmatpush1.msra.mxu0 0.0
        %584 = vmatprep.subr.mxu0 0.0
        %585 = vmatpush1.msra.mxu0 0.0
        %586 = vmatprep.subr.mxu0 0.0
        %587 = vmatpush1.msra.mxu0 0.0
        %588 = vmatprep.subr.mxu0 0.0
        %589 = vmatpush1.msra.mxu0 0.0
        %590 = vmatprep.subr.mxu0 0.0
        %591 = vmatpush1.msra.mxu0 0.0
        %592 = vmatprep.subr.mxu0 0.0
        %593 = vmatpush1.msra.mxu0 0.0
        %594 = vmatprep.mubr.f32.mxu0 0.0
        %v595 = vand.u32 %v238, 4294901760
        %v596 = vsub.f32 %v238, %v595
        %v597 = vand.u32 %v596, 4294901760
        %598 = vmatmul.mubr.f32.gmra.mrb[0].mxu0 %v597
        %v599 = vpop.f32.mrb[0].mxu0
        %v600 = vadd.f32 %v519, %v599
        %v601 = vpop.f32.mrb[0].mxu0
        %602 = vdwg.mxu0
        %603 = vmatprep.subr.mxu0 0.0
        %v604 = vand.u32 %v223, 4294901760
        %v605 = vsub.f32 %v223, %v604
        %v606 = vand.u32 %v605, 4294901760
        %607 = vmatpush1.msra.mxu0 %v606
        %608 = vmatprep.subr.mxu0 0.0
        %v609 = vand.u32 %v224, 4294901760
        %v610 = vsub.f32 %v224, %v609
        %v611 = vand.u32 %v610, 4294901760
        %612 = vmatpush1.msra.mxu0 %v611
        %613 = vmatprep.subr.mxu0 0.0
        %v614 = vand.u32 %v225, 4294901760
        %v615 = vsub.f32 %v225, %v614
        %v616 = vand.u32 %v615, 4294901760
        %617 = vmatpush1.msra.mxu0 %v616
        %618 = vmatprep.subr.mxu0 0.0
        %v619 = vand.u32 %v226, 4294901760
        %v620 = vsub.f32 %v226, %v619
        %v621 = vand.u32 %v620, 4294901760
        %622 = vmatpush1.msra.mxu0 %v621
        %623 = vmatprep.subr.mxu0 0.0
        %v624 = vand.u32 %v227, 4294901760
        %v625 = vsub.f32 %v227, %v624
        %v626 = vand.u32 %v625, 4294901760
        %627 = vmatpush1.msra.mxu0 %v626
        %628 = vmatprep.subr.mxu0 0.0
        %v629 = vand.u32 %v228, 4294901760
        %v630 = vsub.f32 %v228, %v629
        %v631 = vand.u32 %v630, 4294901760
        %632 = vmatpush1.msra.mxu0 %v631
        %633 = vmatprep.subr.mxu0 0.0
        %v634 = vand.u32 %v229, 4294901760
        %v635 = vsub.f32 %v229, %v634
        %v636 = vand.u32 %v635, 4294901760
        %637 = vmatpush1.msra.mxu0 %v636
        %638 = vmatprep.subr.mxu0 0.0
        %v639 = vand.u32 %v230, 4294901760
        %v640 = vsub.f32 %v230, %v639
        %v641 = vand.u32 %v640, 4294901760
        %642 = vmatpush1.msra.mxu0 %v641
        %643 = vmatprep.subr.mxu0 0.0
        %644 = vmatpush1.msra.mxu0 0.0
        %645 = vmatprep.subr.mxu0 0.0
        %646 = vmatpush1.msra.mxu0 0.0
        %647 = vmatprep.subr.mxu0 0.0
        %648 = vmatpush1.msra.mxu0 0.0
        %649 = vmatprep.subr.mxu0 0.0
        %650 = vmatpush1.msra.mxu0 0.0
        %651 = vmatprep.subr.mxu0 0.0
        %652 = vmatpush1.msra.mxu0 0.0
        %653 = vmatprep.subr.mxu0 0.0
        %654 = vmatpush1.msra.mxu0 0.0
        %655 = vmatprep.subr.mxu0 0.0
        %656 = vmatpush1.msra.mxu0 0.0
        %657 = vmatprep.subr.mxu0 0.0
        %658 = vmatpush1.msra.mxu0 0.0
        %659 = vmatprep.subr.mxu0 0.0
        %660 = vmatpush1.msra.mxu0 0.0
        %661 = vmatprep.subr.mxu0 0.0
        %662 = vmatpush1.msra.mxu0 0.0
        %663 = vmatprep.subr.mxu0 0.0
        %664 = vmatpush1.msra.mxu0 0.0
        %665 = vmatprep.subr.mxu0 0.0
        %666 = vmatpush1.msra.mxu0 0.0
        %667 = vmatprep.subr.mxu0 0.0
        %668 = vmatpush1.msra.mxu0 0.0
        %669 = vmatprep.subr.mxu0 0.0
        %670 = vmatpush1.msra.mxu0 0.0
        %671 = vmatprep.subr.mxu0 0.0
        %672 = vmatpush1.msra.mxu0 0.0
        %673 = vmatprep.subr.mxu0 0.0
        %674 = vmatpush1.msra.mxu0 0.0
        %675 = vmatprep.subr.mxu0 0.0
        %676 = vmatpush1.msra.mxu0 0.0
        %677 = vmatprep.subr.mxu0 0.0
        %678 = vmatpush1.msra.mxu0 0.0
        %679 = vmatprep.subr.mxu0 0.0
        %680 = vmatpush1.msra.mxu0 0.0
        %681 = vmatprep.subr.mxu0 0.0
        %682 = vmatpush1.msra.mxu0 0.0
        %683 = vmatprep.subr.mxu0 0.0
        %684 = vmatpush1.msra.mxu0 0.0
        %685 = vmatprep.subr.mxu0 0.0
        %686 = vmatpush1.msra.mxu0 0.0
        %687 = vmatprep.subr.mxu0 0.0
        %688 = vmatpush1.msra.mxu0 0.0
        %689 = vmatprep.subr.mxu0 0.0
        %690 = vmatpush1.msra.mxu0 0.0
        %691 = vmatprep.mubr.f32.mxu0 0.0
        %v692 = vand.u32 %v238, 4294901760
        %693 = vmatmul.mubr.f32.gmra.mrb[0].mxu0 %v692
        %v694 = vpop.f32.mrb[0].mxu0
        %v695 = vadd.f32 %v600, %v694
        %v696 = vpop.f32.mrb[0].mxu0
        %697 = vdwg.mxu0
        %698 = vmatprep.subr.mxu0 0.0
        %v699 = vand.u32 %v223, 4294901760
        %700 = vmatpush1.msra.mxu0 %v699
        %701 = vmatprep.subr.mxu0 0.0
        %v702 = vand.u32 %v224, 4294901760
        %703 = vmatpush1.msra.mxu0 %v702
        %704 = vmatprep.subr.mxu0 0.0
        %v705 = vand.u32 %v225, 4294901760
        %706 = vmatpush1.msra.mxu0 %v705
        %707 = vmatprep.subr.mxu0 0.0
        %v708 = vand.u32 %v226, 4294901760
        %709 = vmatpush1.msra.mxu0 %v708
        %710 = vmatprep.subr.mxu0 0.0
        %v711 = vand.u32 %v227, 4294901760
        %712 = vmatpush1.msra.mxu0 %v711
        %713 = vmatprep.subr.mxu0 0.0
        %v714 = vand.u32 %v228, 4294901760
        %715 = vmatpush1.msra.mxu0 %v714
        %716 = vmatprep.subr.mxu0 0.0
        %v717 = vand.u32 %v229, 4294901760
        %718 = vmatpush1.msra.mxu0 %v717
        %719 = vmatprep.subr.mxu0 0.0
        %v720 = vand.u32 %v230, 4294901760
        %721 = vmatpush1.msra.mxu0 %v720
        %722 = vmatprep.subr.mxu0 0.0
        %723 = vmatpush1.msra.mxu0 0.0
        %724 = vmatprep.subr.mxu0 0.0
        %725 = vmatpush1.msra.mxu0 0.0
        %726 = vmatprep.subr.mxu0 0.0
        %727 = vmatpush1.msra.mxu0 0.0
        %728 = vmatprep.subr.mxu0 0.0
        %729 = vmatpush1.msra.mxu0 0.0
        %730 = vmatprep.subr.mxu0 0.0
        %731 = vmatpush1.msra.mxu0 0.0
        %732 = vmatprep.subr.mxu0 0.0
        %733 = vmatpush1.msra.mxu0 0.0
        %734 = vmatprep.subr.mxu0 0.0
        %735 = vmatpush1.msra.mxu0 0.0
        %736 = vmatprep.subr.mxu0 0.0
        %737 = vmatpush1.msra.mxu0 0.0
        %738 = vmatprep.subr.mxu0 0.0
        %739 = vmatpush1.msra.mxu0 0.0
        %740 = vmatprep.subr.mxu0 0.0
        %741 = vmatpush1.msra.mxu0 0.0
        %742 = vmatprep.subr.mxu0 0.0
        %743 = vmatpush1.msra.mxu0 0.0
        %744 = vmatprep.subr.mxu0 0.0
        %745 = vmatpush1.msra.mxu0 0.0
        %746 = vmatprep.subr.mxu0 0.0
        %747 = vmatpush1.msra.mxu0 0.0
        %748 = vmatprep.subr.mxu0 0.0
        %749 = vmatpush1.msra.mxu0 0.0
        %750 = vmatprep.subr.mxu0 0.0
        %751 = vmatpush1.msra.mxu0 0.0
        %752 = vmatprep.subr.mxu0 0.0
        %753 = vmatpush1.msra.mxu0 0.0
        %754 = vmatprep.subr.mxu0 0.0
        %755 = vmatpush1.msra.mxu0 0.0
        %756 = vmatprep.subr.mxu0 0.0
        %757 = vmatpush1.msra.mxu0 0.0
        %758 = vmatprep.subr.mxu0 0.0
        %759 = vmatpush1.msra.mxu0 0.0
        %760 = vmatprep.subr.mxu0 0.0
        %761 = vmatpush1.msra.mxu0 0.0
        %762 = vmatprep.subr.mxu0 0.0
        %763 = vmatpush1.msra.mxu0 0.0
        %764 = vmatprep.subr.mxu0 0.0
        %765 = vmatpush1.msra.mxu0 0.0
        %766 = vmatprep.subr.mxu0 0.0
        %767 = vmatpush1.msra.mxu0 0.0
        %768 = vmatprep.subr.mxu0 0.0
        %769 = vmatpush1.msra.mxu0 0.0
        %770 = vmatprep.mubr.f32.mxu0 0.0
        %v771 = vand.u32 %v238, 4294901760
        %772 = vmatmul.mubr.f32.gmra.mrb[0].mxu0 %v771
        %v773 = vpop.f32.mrb[0].mxu0
        %v774 = vadd.f32 %v695, %v773
        %v775 = vpop.f32.mrb[0].mxu0
        %776 = vdwg.mxu0
        %v777 = vsel %vm237, %v212, 0
        %779 = vmatprep.subr.mxu0 0.0
        %v780 = vand.u32 %v214, 4294901760
        %781 = vmatpush1.msra.mxu0 %v780
        %782 = vmatprep.subr.mxu0 0.0
        %v783 = vand.u32 %v215, 4294901760
        %784 = vmatpush1.msra.mxu0 %v783
        %785 = vmatprep.subr.mxu0 0.0
        %v786 = vand.u32 %v216, 4294901760
        %787 = vmatpush1.msra.mxu0 %v786
        %788 = vmatprep.subr.mxu0 0.0
        %v789 = vand.u32 %v217, 4294901760
        %790 = vmatpush1.msra.mxu0 %v789
        %791 = vmatprep.subr.mxu0 0.0
        %v792 = vand.u32 %v218, 4294901760
        %793 = vmatpush1.msra.mxu0 %v792
        %794 = vmatprep.subr.mxu0 0.0
        %v795 = vand.u32 %v219, 4294901760
        %796 = vmatpush1.msra.mxu0 %v795
        %797 = vmatprep.subr.mxu0 0.0
        %v798 = vand.u32 %v220, 4294901760
        %799 = vmatpush1.msra.mxu0 %v798
        %800 = vmatprep.subr.mxu0 0.0
        %v801 = vand.u32 %v221, 4294901760
        %802 = vmatpush1.msra.mxu0 %v801
        %803 = vmatprep.subr.mxu0 0.0
        %804 = vmatpush1.msra.mxu0 0.0
        %805 = vmatprep.subr.mxu0 0.0
        %806 = vmatpush1.msra.mxu0 0.0
        %807 = vmatprep.subr.mxu0 0.0
        %808 = vmatpush1.msra.mxu0 0.0
        %809 = vmatprep.subr.mxu0 0.0
        %810 = vmatpush1.msra.mxu0 0.0
        %811 = vmatprep.subr.mxu0 0.0
        %812 = vmatpush1.msra.mxu0 0.0
        %813 = vmatprep.subr.mxu0 0.0
        %814 = vmatpush1.msra.mxu0 0.0
        %815 = vmatprep.subr.mxu0 0.0
        %816 = vmatpush1.msra.mxu0 0.0
        %817 = vmatprep.subr.mxu0 0.0
        %818 = vmatpush1.msra.mxu0 0.0
        %819 = vmatprep.subr.mxu0 0.0
        %820 = vmatpush1.msra.mxu0 0.0
        %821 = vmatprep.subr.mxu0 0.0
        %822 = vmatpush1.msra.mxu0 0.0
        %823 = vmatprep.subr.mxu0 0.0
        %824 = vmatpush1.msra.mxu0 0.0
        %825 = vmatprep.subr.mxu0 0.0
        %826 = vmatpush1.msra.mxu0 0.0
        %827 = vmatprep.subr.mxu0 0.0
        %828 = vmatpush1.msra.mxu0 0.0
        %829 = vmatprep.subr.mxu0 0.0
        %830 = vmatpush1.msra.mxu0 0.0
        %831 = vmatprep.subr.mxu0 0.0
        %832 = vmatpush1.msra.mxu0 0.0
        %833 = vmatprep.subr.mxu0 0.0
        %834 = vmatpush1.msra.mxu0 0.0
        %835 = vmatprep.subr.mxu0 0.0
        %836 = vmatpush1.msra.mxu0 0.0
        %837 = vmatprep.subr.mxu0 0.0
        %838 = vmatpush1.msra.mxu0 0.0
        %839 = vmatprep.subr.mxu0 0.0
        %840 = vmatpush1.msra.mxu0 0.0
        %841 = vmatprep.subr.mxu0 0.0
        %842 = vmatpush1.msra.mxu0 0.0
        %843 = vmatprep.subr.mxu0 0.0
        %844 = vmatpush1.msra.mxu0 0.0
        %845 = vmatprep.subr.mxu0 0.0
        %846 = vmatpush1.msra.mxu0 0.0
        %847 = vmatprep.subr.mxu0 0.0
        %848 = vmatpush1.msra.mxu0 0.0
        %849 = vmatprep.subr.mxu0 0.0
        %850 = vmatpush1.msra.mxu0 0.0
        %851 = vmatprep.mubr.f32.mxu0 0.0
        %v852 = vand.u32 %v777, 4294901760
        %v853 = vsub.f32 %v777, %v852
        %v854 = vand.u32 %v853, 4294901760
        %v855 = vsub.f32 %v853, %v854
        %v856 = vand.u32 %v855, 4294901760
        %857 = vmatmul.mubr.f32.gmra.mrb[0].mxu0 %v856
        %v858 = vpop.f32.mrb[0].mxu0
        %v859 = vadd.f32 %v774, %v858
        %v860 = vpop.f32.mrb[0].mxu0
        %861 = vdwg.mxu0
        %862 = vmatprep.subr.mxu0 0.0
        %v863 = vand.u32 %v214, 4294901760
        %v864 = vsub.f32 %v214, %v863
        %v865 = vand.u32 %v864, 4294901760
        %v866 = vsub.f32 %v864, %v865
        %v867 = vand.u32 %v866, 4294901760
        %868 = vmatpush1.msra.mxu0 %v867
        %869 = vmatprep.subr.mxu0 0.0
        %v870 = vand.u32 %v215, 4294901760
        %v871 = vsub.f32 %v215, %v870
        %v872 = vand.u32 %v871, 4294901760
        %v873 = vsub.f32 %v871, %v872
        %v874 = vand.u32 %v873, 4294901760
        %875 = vmatpush1.msra.mxu0 %v874
        %876 = vmatprep.subr.mxu0 0.0
        %v877 = vand.u32 %v216, 4294901760
        %v878 = vsub.f32 %v216, %v877
        %v879 = vand.u32 %v878, 4294901760
        %v880 = vsub.f32 %v878, %v879
        %v881 = vand.u32 %v880, 4294901760
        %882 = vmatpush1.msra.mxu0 %v881
        %883 = vmatprep.subr.mxu0 0.0
        %v884 = vand.u32 %v217, 4294901760
        %v885 = vsub.f32 %v217, %v884
        %v886 = vand.u32 %v885, 4294901760
        %v887 = vsub.f32 %v885, %v886
        %v888 = vand.u32 %v887, 4294901760
        %889 = vmatpush1.msra.mxu0 %v888
        %890 = vmatprep.subr.mxu0 0.0
        %v891 = vand.u32 %v218, 4294901760
        %v892 = vsub.f32 %v218, %v891
        %v893 = vand.u32 %v892, 4294901760
        %v894 = vsub.f32 %v892, %v893
        %v895 = vand.u32 %v894, 4294901760
        %896 = vmatpush1.msra.mxu0 %v895
        %897 = vmatprep.subr.mxu0 0.0
        %v898 = vand.u32 %v219, 4294901760
        %v899 = vsub.f32 %v219, %v898
        %v900 = vand.u32 %v899, 4294901760
        %v901 = vsub.f32 %v899, %v900
        %v902 = vand.u32 %v901, 4294901760
        %903 = vmatpush1.msra.mxu0 %v902
        %904 = vmatprep.subr.mxu0 0.0
        %v905 = vand.u32 %v220, 4294901760
        %v906 = vsub.f32 %v220, %v905
        %v907 = vand.u32 %v906, 4294901760
        %v908 = vsub.f32 %v906, %v907
        %v909 = vand.u32 %v908, 4294901760
        %910 = vmatpush1.msra.mxu0 %v909
        %911 = vmatprep.subr.mxu0 0.0
        %v912 = vand.u32 %v221, 4294901760
        %v913 = vsub.f32 %v221, %v912
        %v914 = vand.u32 %v913, 4294901760
        %v915 = vsub.f32 %v913, %v914
        %v916 = vand.u32 %v915, 4294901760
        %917 = vmatpush1.msra.mxu0 %v916
        %918 = vmatprep.subr.mxu0 0.0
        %919 = vmatpush1.msra.mxu0 0.0
        %920 = vmatprep.subr.mxu0 0.0
        %921 = vmatpush1.msra.mxu0 0.0
        %922 = vmatprep.subr.mxu0 0.0
        %923 = vmatpush1.msra.mxu0 0.0
        %924 = vmatprep.subr.mxu0 0.0
        %925 = vmatpush1.msra.mxu0 0.0
        %926 = vmatprep.subr.mxu0 0.0
        %927 = vmatpush1.msra.mxu0 0.0
        %928 = vmatprep.subr.mxu0 0.0
        %929 = vmatpush1.msra.mxu0 0.0
        %930 = vmatprep.subr.mxu0 0.0
        %931 = vmatpush1.msra.mxu0 0.0
        %932 = vmatprep.subr.mxu0 0.0
        %933 = vmatpush1.msra.mxu0 0.0
        %934 = vmatprep.subr.mxu0 0.0
        %935 = vmatpush1.msra.mxu0 0.0
        %936 = vmatprep.subr.mxu0 0.0
        %937 = vmatpush1.msra.mxu0 0.0
        %938 = vmatprep.subr.mxu0 0.0
        %939 = vmatpush1.msra.mxu0 0.0
        %940 = vmatprep.subr.mxu0 0.0
        %941 = vmatpush1.msra.mxu0 0.0
        %942 = vmatprep.subr.mxu0 0.0
        %943 = vmatpush1.msra.mxu0 0.0
        %944 = vmatprep.subr.mxu0 0.0
        %945 = vmatpush1.msra.mxu0 0.0
        %946 = vmatprep.subr.mxu0 0.0
        %947 = vmatpush1.msra.mxu0 0.0
        %948 = vmatprep.subr.mxu0 0.0
        %949 = vmatpush1.msra.mxu0 0.0
        %950 = vmatprep.subr.mxu0 0.0
        %951 = vmatpush1.msra.mxu0 0.0
        %952 = vmatprep.subr.mxu0 0.0
        %953 = vmatpush1.msra.mxu0 0.0
        %954 = vmatprep.subr.mxu0 0.0
        %955 = vmatpush1.msra.mxu0 0.0
        %956 = vmatprep.subr.mxu0 0.0
        %957 = vmatpush1.msra.mxu0 0.0
        %958 = vmatprep.subr.mxu0 0.0
        %959 = vmatpush1.msra.mxu0 0.0
        %960 = vmatprep.subr.mxu0 0.0
        %961 = vmatpush1.msra.mxu0 0.0
        %962 = vmatprep.subr.mxu0 0.0
        %963 = vmatpush1.msra.mxu0 0.0
        %964 = vmatprep.subr.mxu0 0.0
        %965 = vmatpush1.msra.mxu0 0.0
        %966 = vmatprep.mubr.f32.mxu0 0.0
        %v967 = vand.u32 %v777, 4294901760
        %968 = vmatmul.mubr.f32.gmra.mrb[0].mxu0 %v967
        %v969 = vpop.f32.mrb[0].mxu0
        %v970 = vadd.f32 %v859, %v969
        %v971 = vpop.f32.mrb[0].mxu0
        %972 = vdwg.mxu0
        %973 = vmatprep.subr.mxu0 0.0
        %v974 = vand.u32 %v214, 4294901760
        %v975 = vsub.f32 %v214, %v974
        %976 = vmatpush1.msra.mxu0 %v975
        %977 = vmatprep.subr.mxu0 0.0
        %v978 = vand.u32 %v215, 4294901760
        %v979 = vsub.f32 %v215, %v978
        %980 = vmatpush1.msra.mxu0 %v979
        %981 = vmatprep.subr.mxu0 0.0
        %v982 = vand.u32 %v216, 4294901760
        %v983 = vsub.f32 %v216, %v982
        %984 = vmatpush1.msra.mxu0 %v983
        %985 = vmatprep.subr.mxu0 0.0
        %v986 = vand.u32 %v217, 4294901760
        %v987 = vsub.f32 %v217, %v986
        %988 = vmatpush1.msra.mxu0 %v987
        %989 = vmatprep.subr.mxu0 0.0
        %v990 = vand.u32 %v218, 4294901760
        %v991 = vsub.f32 %v218, %v990
        %992 = vmatpush1.msra.mxu0 %v991
        %993 = vmatprep.subr.mxu0 0.0
        %v994 = vand.u32 %v219, 4294901760
        %v995 = vsub.f32 %v219, %v994
        %996 = vmatpush1.msra.mxu0 %v995
        %997 = vmatprep.subr.mxu0 0.0
        %v998 = vand.u32 %v220, 4294901760
        %v999 = vsub.f32 %v220, %v998
        %1000 = vmatpush1.msra.mxu0 %v999
        %1001 = vmatprep.subr.mxu0 0.0
        %v1002 = vand.u32 %v221, 4294901760
        %v1003 = vsub.f32 %v221, %v1002
        %1004 = vmatpush1.msra.mxu0 %v1003
        %1005 = vmatprep.subr.mxu0 0.0
        %1006 = vmatpush1.msra.mxu0 0.0
        %1007 = vmatprep.subr.mxu0 0.0
        %1008 = vmatpush1.msra.mxu0 0.0
        %1009 = vmatprep.subr.mxu0 0.0
        %1010 = vmatpush1.msra.mxu0 0.0
        %1011 = vmatprep.subr.mxu0 0.0
        %1012 = vmatpush1.msra.mxu0 0.0
        %1013 = vmatprep.subr.mxu0 0.0
        %1014 = vmatpush1.msra.mxu0 0.0
        %1015 = vmatprep.subr.mxu0 0.0
        %1016 = vmatpush1.msra.mxu0 0.0
        %1017 = vmatprep.subr.mxu0 0.0
        %1018 = vmatpush1.msra.mxu0 0.0
        %1019 = vmatprep.subr.mxu0 0.0
        %1020 = vmatpush1.msra.mxu0 0.0
        %1021 = vmatprep.subr.mxu0 0.0
        %1022 = vmatpush1.msra.mxu0 0.0
        %1023 = vmatprep.subr.mxu0 0.0
        %1024 = vmatpush1.msra.mxu0 0.0
        %1025 = vmatprep.subr.mxu0 0.0
        %1026 = vmatpush1.msra.mxu0 0.0
        %1027 = vmatprep.subr.mxu0 0.0
        %1028 = vmatpush1.msra.mxu0 0.0
        %1029 = vmatprep.subr.mxu0 0.0
        %1030 = vmatpush1.msra.mxu0 0.0
        %1031 = vmatprep.subr.mxu0 0.0
        %1032 = vmatpush1.msra.mxu0 0.0
        %1033 = vmatprep.subr.mxu0 0.0
        %1034 = vmatpush1.msra.mxu0 0.0
        %1035 = vmatprep.subr.mxu0 0.0
        %1036 = vmatpush1.msra.mxu0 0.0
        %1037 = vmatprep.subr.mxu0 0.0
        %1038 = vmatpush1.msra.mxu0 0.0
        %1039 = vmatprep.subr.mxu0 0.0
        %1040 = vmatpush1.msra.mxu0 0.0
        %1041 = vmatprep.subr.mxu0 0.0
        %1042 = vmatpush1.msra.mxu0 0.0
        %1043 = vmatprep.subr.mxu0 0.0
        %1044 = vmatpush1.msra.mxu0 0.0
        %1045 = vmatprep.subr.mxu0 0.0
        %1046 = vmatpush1.msra.mxu0 0.0
        %1047 = vmatprep.subr.mxu0 0.0
        %1048 = vmatpush1.msra.mxu0 0.0
        %1049 = vmatprep.subr.mxu0 0.0
        %1050 = vmatpush1.msra.mxu0 0.0
        %1051 = vmatprep.subr.mxu0 0.0
        %1052 = vmatpush1.msra.mxu0 0.0
        %1053 = vmatprep.mubr.f32.mxu0 0.0
        %v1054 = vand.u32 %v777, 4294901760
        %v1055 = vsub.f32 %v777, %v1054
        %1056 = vmatmul.mubr.f32.gmra.mrb[0].mxu0 %v1055
        %v1057 = vpop.f32.mrb[0].mxu0
        %v1058 = vadd.f32 %v970, %v1057
        %v1059 = vpop.f32.mrb[0].mxu0
        %1060 = vdwg.mxu0
        %1061 = vmatprep.subr.mxu0 0.0
        %v1062 = vand.u32 %v214, 4294901760
        %1063 = vmatpush1.msra.mxu0 %v1062
        %1064 = vmatprep.subr.mxu0 0.0
        %v1065 = vand.u32 %v215, 4294901760
        %1066 = vmatpush1.msra.mxu0 %v1065
        %1067 = vmatprep.subr.mxu0 0.0
        %v1068 = vand.u32 %v216, 4294901760
        %1069 = vmatpush1.msra.mxu0 %v1068
        %1070 = vmatprep.subr.mxu0 0.0
        %v1071 = vand.u32 %v217, 4294901760
        %1072 = vmatpush1.msra.mxu0 %v1071
        %1073 = vmatprep.subr.mxu0 0.0
        %v1074 = vand.u32 %v218, 4294901760
        %1075 = vmatpush1.msra.mxu0 %v1074
        %1076 = vmatprep.subr.mxu0 0.0
        %v1077 = vand.u32 %v219, 4294901760
        %1078 = vmatpush1.msra.mxu0 %v1077
        %1079 = vmatprep.subr.mxu0 0.0
        %v1080 = vand.u32 %v220, 4294901760
        %1081 = vmatpush1.msra.mxu0 %v1080
        %1082 = vmatprep.subr.mxu0 0.0
        %v1083 = vand.u32 %v221, 4294901760
        %1084 = vmatpush1.msra.mxu0 %v1083
        %1085 = vmatprep.subr.mxu0 0.0
        %1086 = vmatpush1.msra.mxu0 0.0
        %1087 = vmatprep.subr.mxu0 0.0
        %1088 = vmatpush1.msra.mxu0 0.0
        %1089 = vmatprep.subr.mxu0 0.0
        %1090 = vmatpush1.msra.mxu0 0.0
        %1091 = vmatprep.subr.mxu0 0.0
        %1092 = vmatpush1.msra.mxu0 0.0
        %1093 = vmatprep.subr.mxu0 0.0
        %1094 = vmatpush1.msra.mxu0 0.0
        %1095 = vmatprep.subr.mxu0 0.0
        %1096 = vmatpush1.msra.mxu0 0.0
        %1097 = vmatprep.subr.mxu0 0.0
        %1098 = vmatpush1.msra.mxu0 0.0
        %1099 = vmatprep.subr.mxu0 0.0
        %1100 = vmatpush1.msra.mxu0 0.0
        %1101 = vmatprep.subr.mxu0 0.0
        %1102 = vmatpush1.msra.mxu0 0.0
        %1103 = vmatprep.subr.mxu0 0.0
        %1104 = vmatpush1.msra.mxu0 0.0
        %1105 = vmatprep.subr.mxu0 0.0
        %1106 = vmatpush1.msra.mxu0 0.0
        %1107 = vmatprep.subr.mxu0 0.0
        %1108 = vmatpush1.msra.mxu0 0.0
        %1109 = vmatprep.subr.mxu0 0.0
        %1110 = vmatpush1.msra.mxu0 0.0
        %1111 = vmatprep.subr.mxu0 0.0
        %1112 = vmatpush1.msra.mxu0 0.0
        %1113 = vmatprep.subr.mxu0 0.0
        %1114 = vmatpush1.msra.mxu0 0.0
        %1115 = vmatprep.subr.mxu0 0.0
        %1116 = vmatpush1.msra.mxu0 0.0
        %1117 = vmatprep.subr.mxu0 0.0
        %1118 = vmatpush1.msra.mxu0 0.0
        %1119 = vmatprep.subr.mxu0 0.0
        %1120 = vmatpush1.msra.mxu0 0.0
        %1121 = vmatprep.subr.mxu0 0.0
        %1122 = vmatpush1.msra.mxu0 0.0
        %1123 = vmatprep.subr.mxu0 0.0
        %1124 = vmatpush1.msra.mxu0 0.0
        %1125 = vmatprep.subr.mxu0 0.0
        %1126 = vmatpush1.msra.mxu0 0.0
        %1127 = vmatprep.subr.mxu0 0.0
        %1128 = vmatpush1.msra.mxu0 0.0
        %1129 = vmatprep.subr.mxu0 0.0
        %1130 = vmatpush1.msra.mxu0 0.0
        %1131 = vmatprep.subr.mxu0 0.0
        %1132 = vmatpush1.msra.mxu0 0.0
        %1133 = vmatprep.mubr.f32.mxu0 0.0
        %v1134 = vand.u32 %v777, 4294901760
        %v1135 = vsub.f32 %v777, %v1134
        %v1136 = vand.u32 %v1135, 4294901760
        %1137 = vmatmul.mubr.f32.gmra.mrb[0].mxu0 %v1136
        %v1138 = vpop.f32.mrb[0].mxu0
        %v1139 = vadd.f32 %v1058, %v1138
        %v1140 = vpop.f32.mrb[0].mxu0
        %1141 = vdwg.mxu0
        %1142 = vmatprep.subr.mxu0 0.0
        %v1143 = vand.u32 %v214, 4294901760
        %v1144 = vsub.f32 %v214, %v1143
        %v1145 = vand.u32 %v1144, 4294901760
        %1146 = vmatpush1.msra.mxu0 %v1145
        %1147 = vmatprep.subr.mxu0 0.0
        %v1148 = vand.u32 %v215, 4294901760
        %v1149 = vsub.f32 %v215, %v1148
        %v1150 = vand.u32 %v1149, 4294901760
        %1151 = vmatpush1.msra.mxu0 %v1150
        %1152 = vmatprep.subr.mxu0 0.0
        %v1153 = vand.u32 %v216, 4294901760
        %v1154 = vsub.f32 %v216, %v1153
        %v1155 = vand.u32 %v1154, 4294901760
        %1156 = vmatpush1.msra.mxu0 %v1155
        %1157 = vmatprep.subr.mxu0 0.0
        %v1158 = vand.u32 %v217, 4294901760
        %v1159 = vsub.f32 %v217, %v1158
        %v1160 = vand.u32 %v1159, 4294901760
        %1161 = vmatpush1.msra.mxu0 %v1160
        %1162 = vmatprep.subr.mxu0 0.0
        %v1163 = vand.u32 %v218, 4294901760
        %v1164 = vsub.f32 %v218, %v1163
        %v1165 = vand.u32 %v1164, 4294901760
        %1166 = vmatpush1.msra.mxu0 %v1165
        %1167 = vmatprep.subr.mxu0 0.0
        %v1168 = vand.u32 %v219, 4294901760
        %v1169 = vsub.f32 %v219, %v1168
        %v1170 = vand.u32 %v1169, 4294901760
        %1171 = vmatpush1.msra.mxu0 %v1170
        %1172 = vmatprep.subr.mxu0 0.0
        %v1173 = vand.u32 %v220, 4294901760
        %v1174 = vsub.f32 %v220, %v1173
        %v1175 = vand.u32 %v1174, 4294901760
        %1176 = vmatpush1.msra.mxu0 %v1175
        %1177 = vmatprep.subr.mxu0 0.0
        %v1178 = vand.u32 %v221, 4294901760
        %v1179 = vsub.f32 %v221, %v1178
        %v1180 = vand.u32 %v1179, 4294901760
        %1181 = vmatpush1.msra.mxu0 %v1180
        %1182 = vmatprep.subr.mxu0 0.0
        %1183 = vmatpush1.msra.mxu0 0.0
        %1184 = vmatprep.subr.mxu0 0.0
        %1185 = vmatpush1.msra.mxu0 0.0
        %1186 = vmatprep.subr.mxu0 0.0
        %1187 = vmatpush1.msra.mxu0 0.0
        %1188 = vmatprep.subr.mxu0 0.0
        %1189 = vmatpush1.msra.mxu0 0.0
        %1190 = vmatprep.subr.mxu0 0.0
        %1191 = vmatpush1.msra.mxu0 0.0
        %1192 = vmatprep.subr.mxu0 0.0
        %1193 = vmatpush1.msra.mxu0 0.0
        %1194 = vmatprep.subr.mxu0 0.0
        %1195 = vmatpush1.msra.mxu0 0.0
        %1196 = vmatprep.subr.mxu0 0.0
        %1197 = vmatpush1.msra.mxu0 0.0
        %1198 = vmatprep.subr.mxu0 0.0
        %1199 = vmatpush1.msra.mxu0 0.0
        %1200 = vmatprep.subr.mxu0 0.0
        %1201 = vmatpush1.msra.mxu0 0.0
        %1202 = vmatprep.subr.mxu0 0.0
        %1203 = vmatpush1.msra.mxu0 0.0
        %1204 = vmatprep.subr.mxu0 0.0
        %1205 = vmatpush1.msra.mxu0 0.0
        %1206 = vmatprep.subr.mxu0 0.0
        %1207 = vmatpush1.msra.mxu0 0.0
        %1208 = vmatprep.subr.mxu0 0.0
        %1209 = vmatpush1.msra.mxu0 0.0
        %1210 = vmatprep.subr.mxu0 0.0
        %1211 = vmatpush1.msra.mxu0 0.0
        %1212 = vmatprep.subr.mxu0 0.0
        %1213 = vmatpush1.msra.mxu0 0.0
        %1214 = vmatprep.subr.mxu0 0.0
        %1215 = vmatpush1.msra.mxu0 0.0
        %1216 = vmatprep.subr.mxu0 0.0
        %1217 = vmatpush1.msra.mxu0 0.0
        %1218 = vmatprep.subr.mxu0 0.0
        %1219 = vmatpush1.msra.mxu0 0.0
        %1220 = vmatprep.subr.mxu0 0.0
        %1221 = vmatpush1.msra.mxu0 0.0
        %1222 = vmatprep.subr.mxu0 0.0
        %1223 = vmatpush1.msra.mxu0 0.0
        %1224 = vmatprep.subr.mxu0 0.0
        %1225 = vmatpush1.msra.mxu0 0.0
        %1226 = vmatprep.subr.mxu0 0.0
        %1227 = vmatpush1.msra.mxu0 0.0
        %1228 = vmatprep.subr.mxu0 0.0
        %1229 = vmatpush1.msra.mxu0 0.0
        %1230 = vmatprep.mubr.f32.mxu0 0.0
        %v1231 = vand.u32 %v777, 4294901760
        %1232 = vmatmul.mubr.f32.gmra.mrb[0].mxu0 %v1231
        %v1233 = vpop.f32.mrb[0].mxu0
        %v1234 = vadd.f32 %v1139, %v1233
        %v1235 = vpop.f32.mrb[0].mxu0
        %1236 = vdwg.mxu0
        %1237 = vmatprep.subr.mxu0 0.0
        %v1238 = vand.u32 %v214, 4294901760
        %1239 = vmatpush1.msra.mxu0 %v1238
        %1240 = vmatprep.subr.mxu0 0.0
        %v1241 = vand.u32 %v215, 4294901760
        %1242 = vmatpush1.msra.mxu0 %v1241
        %1243 = vmatprep.subr.mxu0 0.0
        %v1244 = vand.u32 %v216, 4294901760
        %1245 = vmatpush1.msra.mxu0 %v1244
        %1246 = vmatprep.subr.mxu0 0.0
        %v1247 = vand.u32 %v217, 4294901760
        %1248 = vmatpush1.msra.mxu0 %v1247
        %1249 = vmatprep.subr.mxu0 0.0
        %v1250 = vand.u32 %v218, 4294901760
        %1251 = vmatpush1.msra.mxu0 %v1250
        %1252 = vmatprep.subr.mxu0 0.0
        %v1253 = vand.u32 %v219, 4294901760
        %1254 = vmatpush1.msra.mxu0 %v1253
        %1255 = vmatprep.subr.mxu0 0.0
        %v1256 = vand.u32 %v220, 4294901760
        %1257 = vmatpush1.msra.mxu0 %v1256
        %1258 = vmatprep.subr.mxu0 0.0
        %v1259 = vand.u32 %v221, 4294901760
        %1260 = vmatpush1.msra.mxu0 %v1259
        %1261 = vmatprep.subr.mxu0 0.0
        %1262 = vmatpush1.msra.mxu0 0.0
        %1263 = vmatprep.subr.mxu0 0.0
        %1264 = vmatpush1.msra.mxu0 0.0
        %1265 = vmatprep.subr.mxu0 0.0
        %1266 = vmatpush1.msra.mxu0 0.0
        %1267 = vmatprep.subr.mxu0 0.0
        %1268 = vmatpush1.msra.mxu0 0.0
        %1269 = vmatprep.subr.mxu0 0.0
        %1270 = vmatpush1.msra.mxu0 0.0
        %1271 = vmatprep.subr.mxu0 0.0
        %1272 = vmatpush1.msra.mxu0 0.0
        %1273 = vmatprep.subr.mxu0 0.0
        %1274 = vmatpush1.msra.mxu0 0.0
        %1275 = vmatprep.subr.mxu0 0.0
        %1276 = vmatpush1.msra.mxu0 0.0
        %1277 = vmatprep.subr.mxu0 0.0
        %1278 = vmatpush1.msra.mxu0 0.0
        %1279 = vmatprep.subr.mxu0 0.0
        %1280 = vmatpush1.msra.mxu0 0.0
        %1281 = vmatprep.subr.mxu0 0.0
        %1282 = vmatpush1.msra.mxu0 0.0
        %1283 = vmatprep.subr.mxu0 0.0
        %1284 = vmatpush1.msra.mxu0 0.0
        %1285 = vmatprep.subr.mxu0 0.0
        %1286 = vmatpush1.msra.mxu0 0.0
        %1287 = vmatprep.subr.mxu0 0.0
        %1288 = vmatpush1.msra.mxu0 0.0
        %1289 = vmatprep.subr.mxu0 0.0
        %1290 = vmatpush1.msra.mxu0 0.0
        %1291 = vmatprep.subr.mxu0 0.0
        %1292 = vmatpush1.msra.mxu0 0.0
        %1293 = vmatprep.subr.mxu0 0.0
        %1294 = vmatpush1.msra.mxu0 0.0
        %1295 = vmatprep.subr.mxu0 0.0
        %1296 = vmatpush1.msra.mxu0 0.0
        %1297 = vmatprep.subr.mxu0 0.0
        %1298 = vmatpush1.msra.mxu0 0.0
        %1299 = vmatprep.subr.mxu0 0.0
        %1300 = vmatpush1.msra.mxu0 0.0
        %1301 = vmatprep.subr.mxu0 0.0
        %1302 = vmatpush1.msra.mxu0 0.0
        %1303 = vmatprep.subr.mxu0 0.0
        %1304 = vmatpush1.msra.mxu0 0.0
        %1305 = vmatprep.subr.mxu0 0.0
        %1306 = vmatpush1.msra.mxu0 0.0
        %1307 = vmatprep.subr.mxu0 0.0
        %1308 = vmatpush1.msra.mxu0 0.0
        %1309 = vmatprep.mubr.f32.mxu0 0.0
        %v1310 = vand.u32 %v777, 4294901760
        %1311 = vmatmul.mubr.f32.gmra.mrb[0].mxu0 %v1310
        %v1312 = vpop.f32.mrb[0].mxu0
        %v1313 = vadd.f32 %v1234, %v1312
        %v1314 = vpop.f32.mrb[0].mxu0
        %1315 = vdwg.mxu0
        %v1316 = vld [vmem:[%s2] sm:$0x1]
        %v1318 = vlaneseq
        %v1319 = vshrl.u32 %v1318, 7
        %v1320 = vsub.s32 0, %v1319
        %v1321 = vrot.slane %v1316, %v1320
        %v1323 = vadd.f32 %v1313, %v1321
        %s1324 = sld [smem:[#allocation2]]
        %vm1325 = vcmp.gt.f32.partialorder %v1323, 0.0
        %v1326 = vstv %s1324
        %v1327 = vmul.f32 %v1326, %v1323
        %v1328 = vsel %vm1325, %v1323, %v1327
        %1329 = vst [vmem:[%s206] sm:$0xff] %v1328
        %s1330 = sand.u32 %s117, 1
        %s1331 = scalar_lea.sflag [#allocation5], %s1330
        %s1332 = sand.u32 %s117, 1
        %s1333 = smul.addr %s1332, 8
        %s1334 = scalar_lea.vmem [#allocation6], %s1333
        // Predicated region
        $region41: #{tpu_custom_call.1} parent=35 // pred_check
          %p1335 = pneg %p127
        $region42: #{tpu_custom_call.1} parent=35 // pred_check_branch
          %1337 = sbr.rel (%p1335) target = $region44
        $region43: #{tpu_custom_call.1} parent=35 // pred_region
          %s1339 = ssub.s32 128, 128
          %1340 = vsyncadd %s1331, %s1339
          %s1341 = smul.addr %s20, 128
          %s1342 = scalar_lea.hbm %s4, %s1341
          %s1344 = sshll.u32 %s1334, 4
          %s1345 = int_to_ptr.vmem [resolvable:$true] %s1344
          %1347 = dma.vmem_to_hbm [thread:$0]  %s1345, 128, %s1342, %s1331
        $region44: #{tpu_custom_call.1} parent=35 // pred_fallthru
          _
      $region36: #{tpu_custom_call.1} parent=5 // pred_fallthru
        _
      %p1348 = scmp.le.s32.totalorder 2, %s15
      // Predicated region
      $region45: #{tpu_custom_call.1} parent=5 // pred_check
        %p1349 = pneg %p1348
      $region46: #{tpu_custom_call.1} parent=5 // pred_check_branch
        %1351 = sbr.rel (%p1349) target = $region48
      $region47: #{tpu_custom_call.1} parent=5 // pred_region
        %s1352 = ssub.s32 %s15, 2
        // Predicated region
        $region49: #{tpu_custom_call.1} parent=47 // pred_check
          %p1353 = pneg %p133
        $region50: #{tpu_custom_call.1} parent=47 // pred_check_branch
          %1355 = sbr.rel (%p1353) target = $region52
        $region51: #{tpu_custom_call.1} parent=47 // pred_region
          %s1356 = sand.u32 %s118, 1
          %s1357 = scalar_lea.sflag [#allocation5], %s1356
          %s1358 = sand.u32 %s118, 1
          %s1359 = smul.addr %s1358, 8
          %s1360 = scalar_lea.vmem [#allocation6], %s1359
          %1361 = dma.done %s1357, 128
        $region52: #{tpu_custom_call.1} parent=47 // pred_fallthru
          _
      $region48: #{tpu_custom_call.1} parent=5 // pred_fallthru
        _
    $region6: #{tpu_custom_call.1} parent=1 // loop_footer
      %s19 = sadd.s32 1, %s15
    $region7: #{tpu_custom_call.1} parent=1 // loop_footer_branch
      %14 = sbr.rel target = $region3
    $region8: #{tpu_custom_call.1} parent=1 // loop_exit
      _
    %1362 = vsyncpa [#allocation4], 1
    %s1363 = scalar_lea.sflag [#allocation4], 1
    %1364 = vsyncpa %s1363, 1
    %1365 = vsyncpa [#allocation5], 1
    %s1366 = scalar_lea.sflag [#allocation5], 1
    %1367 = vsyncpa %s1366, 1

</llo_original>
